<compile_context>
chip_gen: v5e
topology: v5e:2x2
jax: 0.10.0
libtpu: 0.0.40
codegen_flags: <defaults>
</compile_context>

<pallas_src>
import functools
import math

import jax
import jax.numpy as jnp
from jax import lax
from jax.experimental import pallas as pl
from jax.experimental.pallas import tpu as pltpu

ACCOUNT_DIM = 16
HIDDEN_DIM = 32
BATCH = 8            # small demo batch; the grid scales to arbitrary B
TILE_B = 8192        # per-step batch tile for large B

_INV_SQRT2 = 1.0 / math.sqrt(2.0)


def _gelu_exact(x):
    # torch.nn.GELU() default (approximate='none'): 0.5*x*(1+erf(x/sqrt(2)))
    return 0.5 * x * (1.0 + lax.erf(x * _INV_SQRT2))


def _round_up(n, m):
    return ((n + m - 1) // m) * m


def follow_pred_kernel(f_ref, t_ref, w_enc_ref, b_enc_ref,
                       w1_ref, b1_ref, w2_ref, b2_ref, w3_ref, b3_ref,
                       out_ref):
    H = HIDDEN_DIM
    tile_b = f_ref.shape[0]

    # In-kernel lane concat + bf16 cast (cheap VPU) instead of wrapper-side HBM ops.
    ft = jnp.concatenate([f_ref[...].astype(jnp.bfloat16),
                          t_ref[...].astype(jnp.bfloat16)], axis=-1)    # (tile_b, 2A)

    # Fused follower/target encoders: ONE MXU pass through block-diagonal W_enc.
    enc = jnp.dot(ft, w_enc_ref[...], preferred_element_type=jnp.float32)
    enc = _gelu_exact(enc + b_enc_ref[...])                              # (tile_b, 2H) f32
    prod = enc[:, :H] * enc[:, H:]                                       # fe * te

    # Head layer 1 as ONE K=96 matmul: lane-concat [fe|te|fe*te] in bf16.
    x1 = jnp.concatenate([enc.astype(jnp.bfloat16),
                          prod.astype(jnp.bfloat16)], axis=-1)           # (tile_b, 3H)
    h1 = _gelu_exact(jnp.dot(x1, w1_ref[...],
                             preferred_element_type=jnp.float32) + b1_ref[...])

    h2 = _gelu_exact(jnp.dot(h1.astype(jnp.bfloat16), w2_ref[...],
                             preferred_element_type=jnp.float32) + b2_ref[...])

    # Final 16 -> 1 layer on the VPU/XLU (an N=1 MXU matmul wastes 255/256 lanes).
    pred = jnp.sum(h2 * w3_ref[...], axis=-1, keepdims=True) + b3_ref[...]   # (tile_b, 1)

    # Lane-dense store: out[r, c] = pred[r*128 + c].  Pack 128 consecutive rows into
    # the 128 lanes of one output row via a one-hot sublane reduction (vanilla slice /
    # multiply / axis-0 sum), avoiding padded (tile_b,1) output buffers and masked
    # 1-lane stores without relying on an exotic vector reshape.
    eye = (lax.broadcasted_iota(jnp.int32, (128, 128), 0) ==
           lax.broadcasted_iota(jnp.int32, (128, 128), 1)).astype(jnp.float32)
    for r in range(tile_b // 128):                       # static unroll
        col = pred[r * 128:(r + 1) * 128, :]             # (128, 1)
        out_ref[r, :] = jnp.sum(col * eye, axis=0)       # (128,), lane-major


# ---------------- parameters ----------------

def init_linear_params(key, in_dim, out_dim):
    # Mimics PyTorch's uniform(-1/sqrt(in), 1/sqrt(in)); weights stored (in, out).
    kw, kb = jax.random.split(key)
    bound = 1.0 / math.sqrt(in_dim)
    w = jax.random.uniform(kw, (in_dim, out_dim), jnp.float32, -bound, bound)
    b = jax.random.uniform(kb, (1, out_dim), jnp.float32, -bound, bound)
    return w, b


def init_params(key):
    h = HIDDEN_DIM
    keys = jax.random.split(key, 5)
    wf, bf = init_linear_params(keys[0], ACCOUNT_DIM, h)       # fe
    wt, bt = init_linear_params(keys[1], ACCOUNT_DIM, h)       # te
    w1, b1 = init_linear_params(keys[2], 3 * h, h)             # head[0]
    w2, b2 = init_linear_params(keys[3], h, h // 2)            # head[2]
    w3, b3 = init_linear_params(keys[4], h // 2, 1)            # head[4]
    return (wf, bf, wt, bt, w1, b1, w2, b2, w3, b3)


def pack_params(params):
    """Pack logical (f32, (in,out)) params into the kernel's fused layout."""
    wf, bf, wt, bt, w1, b1, w2, b2, w3, b3 = params
    a, h = ACCOUNT_DIM, HIDDEN_DIM
    w_enc = jnp.zeros((2 * a, 2 * h), jnp.float32)
    w_enc = w_enc.at[:a, :h].set(wf).at[a:, h:].set(wt)        # block-diagonal
    b_enc = jnp.concatenate([bf, bt], axis=-1)                 # (1, 2H)
    w3_row = w3.T                                              # (1, H//2) f32 for VPU layer
    to_bf16 = lambda x: x.astype(jnp.bfloat16)
    # MXU weights in bf16; biases and the final-layer row stay f32.
    return (to_bf16(w_enc), b_enc, to_bf16(w1), b1, to_bf16(w2), b2, w3_row, b3)


# ---------------- wrapper ----------------

@functools.partial(jax.jit, static_argnames=("tile_b",))
def follow_pred(f, t, packed, *, tile_b=TILE_B):
    B = f.shape[0]
    if B <= 1024:
        # Single tile, rounded to 128 so the (tb//128, 128) output block is legal.
        tb = max(128, _round_up(B, 128))
    else:
        # >=2 grid steps so both v7x TensorCores get work; tile a multiple of 1024 so
        # the output block's sublane dim (tb//128) stays 8-aligned.
        tb = min(tile_b, _round_up((B + 1) // 2, 1024))
    b_pad = _round_up(B, tb)
    if b_pad != B:
        pad = ((0, b_pad - B), (0, 0))
        f = jnp.pad(f, pad)
        t = jnp.pad(t, pad)

    grid = (b_pad // tb,)
    in_specs = [
        pl.BlockSpec((tb, ACCOUNT_DIM), lambda i: (i, 0)),     # f (f32, cast in-kernel)
        pl.BlockSpec((tb, ACCOUNT_DIM), lambda i: (i, 0)),     # t
    ]
    # Weights/biases: full-array blocks with constant index map -> fetched once,
    # VMEM-resident for the whole grid.
    in_specs += [pl.BlockSpec(p.shape, lambda i: (0, 0)) for p in packed]

    out = pl.pallas_call(
        follow_pred_kernel,
        out_shape=jax.ShapeDtypeStruct((b_pad // 128, 128), jnp.float32),
        grid=grid,
        in_specs=in_specs,
        out_specs=pl.BlockSpec((tb // 128, 128), lambda i: (i, 0)),
        compiler_params=pltpu.CompilerParams(
            dimension_semantics=("parallel",),     # megacore sharding on v7x
            vmem_limit_bytes=48 * 1024 * 1024),    # headroom for large tiles
    )(f, t, *packed)
    # out[r, c] = prediction for batch row r*128 + c  -> flatten row-major.
    return out.reshape(-1)[:B]


# ---------------- references ----------------

def follow_pred_ref_f32(f, t, params):
    # Pure-f32 reference matching the PyTorch module exactly.
    wf, bf, wt, bt, w1, b1, w2, b2, w3, b3 = params
    fe = _gelu_exact(f @ wf + bf)
    te = _gelu_exact(t @ wt + bt)
    x = jnp.concatenate([fe, te, fe * te], axis=-1)
    h1 = _gelu_exact(x @ w1 + b1)
    h2 = _gelu_exact(h1 @ w2 + b2)
    return (h2 @ w3 + b3)[:, 0]


def follow_pred_ref_bf16(f, t, packed):
    # Mirrors the kernel's bf16-MXU / f32-accumulate numerics.
    w_enc, b_enc, w1, b1, w2, b2, w3_row, b3 = packed
    H = HIDDEN_DIM
    ft = jnp.concatenate([f.astype(jnp.bfloat16), t.astype(jnp.bfloat16)], axis=-1)
    enc = _gelu_exact(jnp.dot(ft, w_enc, preferred_element_type=jnp.float32) + b_enc)
    prod = enc[:, :H] * enc[:, H:]
    x1 = jnp.concatenate([enc.astype(jnp.bfloat16), prod.astype(jnp.bfloat16)], axis=-1)
    h1 = _gelu_exact(jnp.dot(x1, w1, preferred_element_type=jnp.float32) + b1)
    h2 = _gelu_exact(jnp.dot(h1.astype(jnp.bfloat16), w2,
                             preferred_element_type=jnp.float32) + b2)
    return jnp.sum(h2 * w3_row, axis=-1) + b3[0, 0]


if __name__ == "__main__":
    key = jax.random.PRNGKey(0)
    kf, kt, kp = jax.random.split(key, 3)

    f = jax.random.normal(kf, (BATCH, ACCOUNT_DIM), jnp.float32)
    t = jax.random.normal(kt, (BATCH, ACCOUNT_DIM), jnp.float32)
    params = init_params(kp)
    packed = pack_params(params)

    out = jax.block_until_ready(follow_pred(f, t, packed))
    assert out.shape == (BATCH,)

    # Tight check against a pure-JAX mirror of the kernel's bf16/f32 numerics.
    ref_b = follow_pred_ref_bf16(f, t, packed)
    assert jnp.allclose(out, ref_b, atol=2e-3, rtol=2e-3), (out, ref_b)

    # Loose check against the full-precision (PyTorch-equivalent) forward.
    ref_f = follow_pred_ref_f32(f, t, params)
    assert jnp.allclose(out, ref_f, atol=5e-2, rtol=5e-2), (out, ref_f)

    print("KERNEL_OK")
</pallas_src>

<mosaic_0001>
module attributes {stable_mosaic.version = 11 : i64} {
  func.func @follow_pred_kernel(%arg0: i32, %arg1: memref<128x16xf32, #tpu.memory_space<vmem>>, %arg2: memref<128x16xf32, #tpu.memory_space<vmem>>, %arg3: memref<32x64xbf16, #tpu.memory_space<vmem>>, %arg4: memref<1x64xf32, #tpu.memory_space<vmem>>, %arg5: memref<96x32xbf16, #tpu.memory_space<vmem>>, %arg6: memref<1x32xf32, #tpu.memory_space<vmem>>, %arg7: memref<32x16xbf16, #tpu.memory_space<vmem>>, %arg8: memref<1x16xf32, #tpu.memory_space<vmem>>, %arg9: memref<1x16xf32, #tpu.memory_space<vmem>>, %arg10: memref<1x1xf32, #tpu.memory_space<vmem>>, %arg11: memref<1x128xf32, #tpu.memory_space<vmem>>) attributes {dimension_semantics = [#tpu.dimension_semantics<parallel>], iteration_bounds = array<i64: 1>, scalar_prefetch = 0 : i64, scratch_operands = 0 : i64, tpu.core_type = #tpu.core_type<tc>, window_params = [{transform_indices = @transform_0, window_bounds = array<i64: 128, 16>}, {transform_indices = @transform_1, window_bounds = array<i64: 128, 16>}, {pipeline_mode = #tpu.pipeline_mode<synchronous>, transform_indices = @transform_2, window_bounds = array<i64: 32, 64>}, {pipeline_mode = #tpu.pipeline_mode<synchronous>, transform_indices = @transform_3, window_bounds = array<i64: 1, 64>}, {pipeline_mode = #tpu.pipeline_mode<synchronous>, transform_indices = @transform_4, window_bounds = array<i64: 96, 32>}, {pipeline_mode = #tpu.pipeline_mode<synchronous>, transform_indices = @transform_5, window_bounds = array<i64: 1, 32>}, {pipeline_mode = #tpu.pipeline_mode<synchronous>, transform_indices = @transform_6, window_bounds = array<i64: 32, 16>}, {pipeline_mode = #tpu.pipeline_mode<synchronous>, transform_indices = @transform_7, window_bounds = array<i64: 1, 16>}, {pipeline_mode = #tpu.pipeline_mode<synchronous>, transform_indices = @transform_8, window_bounds = array<i64: 1, 16>}, {pipeline_mode = #tpu.pipeline_mode<synchronous>, transform_indices = @transform_9, window_bounds = array<i64: 1, 1>}, {transform_indices = @transform_10, window_bounds = array<i64: 1, 128>}]} {
    %c0 = arith.constant 0 : index
    %c0_0 = arith.constant 0 : index
    %0 = vector.load %arg1[%c0, %c0_0] : memref<128x16xf32, #tpu.memory_space<vmem>>, vector<128x16xf32>
    %1 = arith.truncf %0 : vector<128x16xf32> to vector<128x16xbf16>
    %c0_1 = arith.constant 0 : index
    %c0_2 = arith.constant 0 : index
    %2 = vector.load %arg2[%c0_1, %c0_2] : memref<128x16xf32, #tpu.memory_space<vmem>>, vector<128x16xf32>
    %3 = arith.truncf %2 : vector<128x16xf32> to vector<128x16xbf16>
    %4 = tpu.concatenate %1, %3 in 1 : vector<128x16xbf16>, vector<128x16xbf16> -> vector<128x32xbf16>
    %c0_3 = arith.constant 0 : index
    %c0_4 = arith.constant 0 : index
    %5 = vector.load %arg3[%c0_3, %c0_4] : memref<32x64xbf16, #tpu.memory_space<vmem>>, vector<32x64xbf16>
    %cst = arith.constant dense<0.000000e+00> : vector<128x64xf32>
    %6 = tpu.matmul %4, %5, %cst {dimension_numbers = #tpu.dot_dimension_numbers<[1], [0], [0], [1], [0, 0, 1, 1], [], []>} : vector<128x32xbf16>, vector<32x64xbf16>, vector<128x64xf32> -> vector<128x64xf32>
    %c0_5 = arith.constant 0 : index
    %c0_6 = arith.constant 0 : index
    %7 = vector.load %arg4[%c0_5, %c0_6] : memref<1x64xf32, #tpu.memory_space<vmem>>, vector<1x64xf32>
    %8 = vector.broadcast %7 : vector<1x64xf32> to vector<128x64xf32>
    %9 = arith.addf %6, %8 : vector<128x64xf32>
    %cst_7 = arith.constant 5.000000e-01 : f32
    %10 = vector.broadcast %cst_7 : f32 to vector<128x64xf32>
    %11 = arith.mulf %10, %9 : vector<128x64xf32>
    %cst_8 = arith.constant 0.707106769 : f32
    %12 = vector.broadcast %cst_8 : f32 to vector<128x64xf32>
    %13 = arith.mulf %9, %12 : vector<128x64xf32>
    %14 = math.erf %13 : vector<128x64xf32>
    %cst_9 = arith.constant 1.000000e+00 : f32
    %15 = vector.broadcast %cst_9 : f32 to vector<128x64xf32>
    %16 = arith.addf %15, %14 : vector<128x64xf32>
    %17 = arith.mulf %11, %16 : vector<128x64xf32>
    %18 = vector.extract_strided_slice %17 {offsets = [0, 0], sizes = [128, 32], strides = [1, 1]} : vector<128x64xf32> to vector<128x32xf32>
    %19 = vector.extract_strided_slice %17 {offsets = [0, 32], sizes = [128, 32], strides = [1, 1]} : vector<128x64xf32> to vector<128x32xf32>
    %20 = arith.mulf %18, %19 : vector<128x32xf32>
    %21 = arith.truncf %17 : vector<128x64xf32> to vector<128x64xbf16>
    %22 = arith.truncf %20 : vector<128x32xf32> to vector<128x32xbf16>
    %23 = tpu.concatenate %21, %22 in 1 : vector<128x64xbf16>, vector<128x32xbf16> -> vector<128x96xbf16>
    %c0_10 = arith.constant 0 : index
    %c0_11 = arith.constant 0 : index
    %24 = vector.load %arg5[%c0_10, %c0_11] : memref<96x32xbf16, #tpu.memory_space<vmem>>, vector<96x32xbf16>
    %cst_12 = arith.constant dense<0.000000e+00> : vector<128x32xf32>
    %25 = tpu.matmul %23, %24, %cst_12 {dimension_numbers = #tpu.dot_dimension_numbers<[1], [0], [0], [1], [0, 0, 1, 1], [], []>} : vector<128x96xbf16>, vector<96x32xbf16>, vector<128x32xf32> -> vector<128x32xf32>
    %c0_13 = arith.constant 0 : index
    %c0_14 = arith.constant 0 : index
    %26 = vector.load %arg6[%c0_13, %c0_14] : memref<1x32xf32, #tpu.memory_space<vmem>>, vector<1x32xf32>
    %27 = vector.broadcast %26 : vector<1x32xf32> to vector<128x32xf32>
    %28 = arith.addf %25, %27 : vector<128x32xf32>
    %cst_15 = arith.constant 5.000000e-01 : f32
    %29 = vector.broadcast %cst_15 : f32 to vector<128x32xf32>
    %30 = arith.mulf %29, %28 : vector<128x32xf32>
    %cst_16 = arith.constant 0.707106769 : f32
    %31 = vector.broadcast %cst_16 : f32 to vector<128x32xf32>
    %32 = arith.mulf %28, %31 : vector<128x32xf32>
    %33 = math.erf %32 : vector<128x32xf32>
    %cst_17 = arith.constant 1.000000e+00 : f32
    %34 = vector.broadcast %cst_17 : f32 to vector<128x32xf32>
    %35 = arith.addf %34, %33 : vector<128x32xf32>
    %36 = arith.mulf %30, %35 : vector<128x32xf32>
    %37 = arith.truncf %36 : vector<128x32xf32> to vector<128x32xbf16>
    %c0_18 = arith.constant 0 : index
    %c0_19 = arith.constant 0 : index
    %38 = vector.load %arg7[%c0_18, %c0_19] : memref<32x16xbf16, #tpu.memory_space<vmem>>, vector<32x16xbf16>
    %cst_20 = arith.constant dense<0.000000e+00> : vector<128x16xf32>
    %39 = tpu.matmul %37, %38, %cst_20 {dimension_numbers = #tpu.dot_dimension_numbers<[1], [0], [0], [1], [0, 0, 1, 1], [], []>} : vector<128x32xbf16>, vector<32x16xbf16>, vector<128x16xf32> -> vector<128x16xf32>
    %c0_21 = arith.constant 0 : index
    %c0_22 = arith.constant 0 : index
    %40 = vector.load %arg8[%c0_21, %c0_22] : memref<1x16xf32, #tpu.memory_space<vmem>>, vector<1x16xf32>
    %41 = vector.broadcast %40 : vector<1x16xf32> to vector<128x16xf32>
    %42 = arith.addf %39, %41 : vector<128x16xf32>
    %cst_23 = arith.constant 5.000000e-01 : f32
    %43 = vector.broadcast %cst_23 : f32 to vector<128x16xf32>
    %44 = arith.mulf %43, %42 : vector<128x16xf32>
    %cst_24 = arith.constant 0.707106769 : f32
    %45 = vector.broadcast %cst_24 : f32 to vector<128x16xf32>
    %46 = arith.mulf %42, %45 : vector<128x16xf32>
    %47 = math.erf %46 : vector<128x16xf32>
    %cst_25 = arith.constant 1.000000e+00 : f32
    %48 = vector.broadcast %cst_25 : f32 to vector<128x16xf32>
    %49 = arith.addf %48, %47 : vector<128x16xf32>
    %50 = arith.mulf %44, %49 : vector<128x16xf32>
    %c0_26 = arith.constant 0 : index
    %c0_27 = arith.constant 0 : index
    %51 = vector.load %arg9[%c0_26, %c0_27] : memref<1x16xf32, #tpu.memory_space<vmem>>, vector<1x16xf32>
    %52 = vector.broadcast %51 : vector<1x16xf32> to vector<128x16xf32>
    %53 = arith.mulf %50, %52 : vector<128x16xf32>
    %cst_28 = arith.constant dense<0.000000e+00> : vector<128xf32>
    %54 = vector.multi_reduction <add>, %53, %cst_28 [1] : vector<128x16xf32> to vector<128xf32>
    %55 = vector.shape_cast %54 : vector<128xf32> to vector<128x1xf32>
    %c0_29 = arith.constant 0 : index
    %c0_30 = arith.constant 0 : index
    %56 = vector.load %arg10[%c0_29, %c0_30] : memref<1x1xf32, #tpu.memory_space<vmem>>, vector<1x1xf32>
    %57 = vector.broadcast %56 : vector<1x1xf32> to vector<128x1xf32>
    %58 = arith.addf %55, %57 : vector<128x1xf32>
    %59 = tpu.iota {dimensions = array<i32: 0>} : vector<128x128xi32>
    %60 = tpu.iota {dimensions = array<i32: 1>} : vector<128x128xi32>
    %61 = arith.cmpi eq, %59, %60 : vector<128x128xi32>
    %62 = arith.extui %61 : vector<128x128xi1> to vector<128x128xi32>
    %63 = arith.sitofp %62 : vector<128x128xi32> to vector<128x128xf32>
    %64 = vector.broadcast %58 : vector<128x1xf32> to vector<128x128xf32>
    %65 = arith.mulf %64, %63 : vector<128x128xf32>
    %cst_31 = arith.constant dense<0.000000e+00> : vector<128xf32>
    %66 = vector.multi_reduction <add>, %65, %cst_31 [0] : vector<128x128xf32> to vector<128xf32>
    %c0_32 = arith.constant 0 : index
    %c0_33 = arith.constant 0 : index
    %67 = vector.load %arg11[%c0_32, %c0_33] : memref<1x128xf32, #tpu.memory_space<vmem>>, vector<1x128xf32>
    %68 = vector.shape_cast %67 : vector<1x128xf32> to vector<128xf32>
    %69 = vector.shape_cast %66 : vector<128xf32> to vector<1x128xf32>
    tpu.vector_store %arg11[%c0_32, %c0_33], %69 {strides = array<i32>} : memref<1x128xf32, #tpu.memory_space<vmem>>, vector<1x128xf32>,
    return
  }
  func.func @transform_0(%arg0: i32) -> (i32, i32) {
    %c0_i32 = arith.constant 0 : i32
    %c0_i32_0 = arith.constant 0 : i32
    return %arg0, %c0_i32 : i32, i32
  }
  func.func @transform_1(%arg0: i32) -> (i32, i32) {
    %c0_i32 = arith.constant 0 : i32
    %c0_i32_0 = arith.constant 0 : i32
    return %arg0, %c0_i32 : i32, i32
  }
  func.func @transform_2(%arg0: i32) -> (i32, i32) {
    %c0_i32 = arith.constant 0 : i32
    %c0_i32_0 = arith.constant 0 : i32
    %c0_i32_1 = arith.constant 0 : i32
    return %c0_i32, %c0_i32_0 : i32, i32
  }
  func.func @transform_3(%arg0: i32) -> (i32, i32) {
    %c0_i32 = arith.constant 0 : i32
    %c0_i32_0 = arith.constant 0 : i32
    %c0_i32_1 = arith.constant 0 : i32
    return %c0_i32, %c0_i32_0 : i32, i32
  }
  func.func @transform_4(%arg0: i32) -> (i32, i32) {
    %c0_i32 = arith.constant 0 : i32
    %c0_i32_0 = arith.constant 0 : i32
    %c0_i32_1 = arith.constant 0 : i32
    return %c0_i32, %c0_i32_0 : i32, i32
  }
  func.func @transform_5(%arg0: i32) -> (i32, i32) {
    %c0_i32 = arith.constant 0 : i32
    %c0_i32_0 = arith.constant 0 : i32
    %c0_i32_1 = arith.constant 0 : i32
    return %c0_i32, %c0_i32_0 : i32, i32
  }
  func.func @transform_6(%arg0: i32) -> (i32, i32) {
    %c0_i32 = arith.constant 0 : i32
    %c0_i32_0 = arith.constant 0 : i32
    %c0_i32_1 = arith.constant 0 : i32
    return %c0_i32, %c0_i32_0 : i32, i32
  }
  func.func @transform_7(%arg0: i32) -> (i32, i32) {
    %c0_i32 = arith.constant 0 : i32
    %c0_i32_0 = arith.constant 0 : i32
    %c0_i32_1 = arith.constant 0 : i32
    return %c0_i32, %c0_i32_0 : i32, i32
  }
  func.func @transform_8(%arg0: i32) -> (i32, i32) {
    %c0_i32 = arith.constant 0 : i32
    %c0_i32_0 = arith.constant 0 : i32
    %c0_i32_1 = arith.constant 0 : i32
    return %c0_i32, %c0_i32_0 : i32, i32
  }
  func.func @transform_9(%arg0: i32) -> (i32, i32) {
    %c0_i32 = arith.constant 0 : i32
    %c0_i32_0 = arith.constant 0 : i32
    %c0_i32_1 = arith.constant 0 : i32
    return %c0_i32, %c0_i32_0 : i32, i32
  }
  func.func @transform_10(%arg0: i32) -> (i32, i32) {
    %c0_i32 = arith.constant 0 : i32
    %c0_i32_0 = arith.constant 0 : i32
    return %arg0, %c0_i32 : i32, i32
  }
}

</mosaic_0001>

<llo_original>
// kernel: follow_pred.1
$region0: #{follow_pred.1}
  #allocation0 [shape = 'u32[]', space=smem, size = 0x4, offset = 0x4, fixed_abs, tag = 'smem constant byte address 0x4 - core index']
  #allocation1 [shape = 'u32[72,128]{1,0:T(1,128)}', space=vmem, size = 0x9000, scoped, tag = 'internal scratch']
  #allocation2 [shape = 'f32[1,1]{1,0:T(1,128)S(1)}', space=vmem, size = 0x200, scoped, tag = 'scoped memory for follow_pred.1']
  %s0 = inlined_call_operand.vmem [shape: f32[128,16], index: 0, kind: input, shape index: {}]
  %s1 = inlined_call_operand.vmem [shape: f32[128,16], index: 1, kind: input, shape index: {}]
  %s2 = inlined_call_operand.vmem [shape: bf16[32,64], index: 2, kind: input, shape index: {}]
  %s3 = inlined_call_operand.vmem [shape: f32[1,64], index: 3, kind: input, shape index: {}]
  %s4 = inlined_call_operand.vmem [shape: bf16[96,32], index: 4, kind: input, shape index: {}]
  %s5 = inlined_call_operand.vmem [shape: f32[1,32], index: 5, kind: input, shape index: {}]
  %s6 = inlined_call_operand.vmem [shape: bf16[32,16], index: 6, kind: input, shape index: {}]
  %s7 = inlined_call_operand.vmem [shape: f32[1,16], index: 7, kind: input, shape index: {}]
  %s8 = inlined_call_operand.vmem [shape: f32[1,16], index: 8, kind: input, shape index: {}]
  %s9 = inlined_call_operand.<no memory space> [shape: f32[1,1], index: 9, kind: input, shape index: {}]
  %s10 = inlined_call_operand.vmem [shape: f32[1,128], index: 10, kind: output, shape index: {}]
  %s11 = sld [smem:[#allocation0]]
  $region50: #{follow_pred.1} parent=0
    _
  %s13 = ssub.s32 1, %s11
  %s14 = scalar_select 0, %s13, %s11
  %v15 = vstv %s9
  %16 = vst [vmem:[#allocation2] sm:$0x1] %v15
  // Predicated region
  $region2: #{follow_pred.1} parent=0 // pred_check
    _
  $region3: #{follow_pred.1} parent=0 // pred_check_branch
    %18 = sbr.rel (0) target = $region5
  $region4: #{follow_pred.1} parent=0 // pred_region
    _
  $region5: #{follow_pred.1} parent=0 // pred_fallthru
    _
  // Predicated region
  $region6: #{follow_pred.1} parent=0 // pred_check
    _
  $region7: #{follow_pred.1} parent=0 // pred_check_branch
    %20 = sbr.rel (0) target = $region9
  $region8: #{follow_pred.1} parent=0 // pred_region
    _
  $region9: #{follow_pred.1} parent=0 // pred_fallthru
    _
  // Predicated region
  $region10: #{follow_pred.1} parent=0 // pred_check
    _
  $region11: #{follow_pred.1} parent=0 // pred_check_branch
    %22 = sbr.rel (0) target = $region13
  $region12: #{follow_pred.1} parent=0 // pred_region
    _
  $region13: #{follow_pred.1} parent=0 // pred_fallthru
    _
  // Predicated region
  $region14: #{follow_pred.1} parent=0 // pred_check
    _
  $region15: #{follow_pred.1} parent=0 // pred_check_branch
    %24 = sbr.rel (0) target = $region17
  $region16: #{follow_pred.1} parent=0 // pred_region
    _
  $region17: #{follow_pred.1} parent=0 // pred_fallthru
    _
  // Predicated region
  $region18: #{follow_pred.1} parent=0 // pred_check
    _
  $region19: #{follow_pred.1} parent=0 // pred_check_branch
    %26 = sbr.rel (0) target = $region21
  $region20: #{follow_pred.1} parent=0 // pred_region
    _
  $region21: #{follow_pred.1} parent=0 // pred_fallthru
    _
  // Predicated region
  $region22: #{follow_pred.1} parent=0 // pred_check
    _
  $region23: #{follow_pred.1} parent=0 // pred_check_branch
    %28 = sbr.rel (0) target = $region25
  $region24: #{follow_pred.1} parent=0 // pred_region
    _
  $region25: #{follow_pred.1} parent=0 // pred_fallthru
    _
  // Predicated region
  $region26: #{follow_pred.1} parent=0 // pred_check
    _
  $region27: #{follow_pred.1} parent=0 // pred_check_branch
    %30 = sbr.rel (0) target = $region29
  $region28: #{follow_pred.1} parent=0 // pred_region
    _
  $region29: #{follow_pred.1} parent=0 // pred_fallthru
    _
  // Predicated region
  $region30: #{follow_pred.1} parent=0 // pred_check
    _
  $region31: #{follow_pred.1} parent=0 // pred_check_branch
    %32 = sbr.rel (0) target = $region33
  $region32: #{follow_pred.1} parent=0 // pred_region
    _
  $region33: #{follow_pred.1} parent=0 // pred_fallthru
    _
  // Predicated region
  $region34: #{follow_pred.1} parent=0 // pred_check
    _
  $region35: #{follow_pred.1} parent=0 // pred_check_branch
    %34 = sbr.rel (0) target = $region37
  $region36: #{follow_pred.1} parent=0 // pred_region
    _
  $region37: #{follow_pred.1} parent=0 // pred_fallthru
    _
  // Predicated region
  $region38: #{follow_pred.1} parent=0 // pred_check
    _
  $region39: #{follow_pred.1} parent=0 // pred_check_branch
    %36 = sbr.rel (0) target = $region41
  $region40: #{follow_pred.1} parent=0 // pred_region
    _
  $region41: #{follow_pred.1} parent=0 // pred_fallthru
    _
  %v38 = vld [vmem:[%s0] sm:$0xff]
  %v39 = vld [vmem:[%s0 + $0x8] sm:$0xff]
  %v40 = vld [vmem:[%s0 + $0x10] sm:$0xff]
  %v41 = vld [vmem:[%s0 + $0x18] sm:$0xff]
  %v42 = vld [vmem:[%s0 + $0x20] sm:$0xff]
  %v43 = vld [vmem:[%s0 + $0x28] sm:$0xff]
  %v44 = vld [vmem:[%s0 + $0x30] sm:$0xff]
  %v45 = vld [vmem:[%s0 + $0x38] sm:$0xff]
  %v46 = vld [vmem:[%s0 + $0x40] sm:$0xff]
  %v47 = vld [vmem:[%s0 + $0x48] sm:$0xff]
  %v48 = vld [vmem:[%s0 + $0x50] sm:$0xff]
  %v49 = vld [vmem:[%s0 + $0x58] sm:$0xff]
  %v50 = vld [vmem:[%s0 + $0x60] sm:$0xff]
  %v51 = vld [vmem:[%s0 + $0x68] sm:$0xff]
  %v52 = vld [vmem:[%s0 + $0x70] sm:$0xff]
  %v53 = vld [vmem:[%s0 + $0x78] sm:$0xff]
  %v54 = vpack.c.bf16 %v38, %v38
  %v55 = vpack.c.bf16 %v39, %v39
  %v56 = vpack.c.bf16 %v40, %v40
  %v57 = vpack.c.bf16 %v41, %v41
  %v58 = vpack.c.bf16 %v42, %v42
  %v59 = vpack.c.bf16 %v43, %v43
  %v60 = vpack.c.bf16 %v44, %v44
  %v61 = vpack.c.bf16 %v45, %v45
  %v62 = vpack.c.bf16 %v46, %v46
  %v63 = vpack.c.bf16 %v47, %v47
  %v64 = vpack.c.bf16 %v48, %v48
  %v65 = vpack.c.bf16 %v49, %v49
  %v66 = vpack.c.bf16 %v50, %v50
  %v67 = vpack.c.bf16 %v51, %v51
  %v68 = vpack.c.bf16 %v52, %v52
  %v69 = vpack.c.bf16 %v53, %v53
  %v70 = vld [vmem:[%s1] sm:$0xff]
  %v71 = vld [vmem:[%s1 + $0x8] sm:$0xff]
  %v72 = vld [vmem:[%s1 + $0x10] sm:$0xff]
  %v73 = vld [vmem:[%s1 + $0x18] sm:$0xff]
  %v74 = vld [vmem:[%s1 + $0x20] sm:$0xff]
  %v75 = vld [vmem:[%s1 + $0x28] sm:$0xff]
  %v76 = vld [vmem:[%s1 + $0x30] sm:$0xff]
  %v77 = vld [vmem:[%s1 + $0x38] sm:$0xff]
  %v78 = vld [vmem:[%s1 + $0x40] sm:$0xff]
  %v79 = vld [vmem:[%s1 + $0x48] sm:$0xff]
  %v80 = vld [vmem:[%s1 + $0x50] sm:$0xff]
  %v81 = vld [vmem:[%s1 + $0x58] sm:$0xff]
  %v82 = vld [vmem:[%s1 + $0x60] sm:$0xff]
  %v83 = vld [vmem:[%s1 + $0x68] sm:$0xff]
  %v84 = vld [vmem:[%s1 + $0x70] sm:$0xff]
  %v85 = vld [vmem:[%s1 + $0x78] sm:$0xff]
  %v86 = vpack.c.bf16 %v70, %v70
  %v87 = vpack.c.bf16 %v71, %v71
  %v88 = vpack.c.bf16 %v72, %v72
  %v89 = vpack.c.bf16 %v73, %v73
  %v90 = vpack.c.bf16 %v74, %v74
  %v91 = vpack.c.bf16 %v75, %v75
  %v92 = vpack.c.bf16 %v76, %v76
  %v93 = vpack.c.bf16 %v77, %v77
  %v94 = vpack.c.bf16 %v78, %v78
  %v95 = vpack.c.bf16 %v79, %v79
  %v96 = vpack.c.bf16 %v80, %v80
  %v97 = vpack.c.bf16 %v81, %v81
  %v98 = vpack.c.bf16 %v82, %v82
  %v99 = vpack.c.bf16 %v83, %v83
  %v100 = vpack.c.bf16 %v84, %v84
  %v101 = vpack.c.bf16 %v85, %v85
  %v118 = vunpack.c.l.b16 %v54
  %v119 = vunpack.c.l.b16 %v55
  %v120 = vunpack.c.l.b16 %v56
  %v121 = vunpack.c.l.b16 %v57
  %v122 = vunpack.c.l.b16 %v58
  %v123 = vunpack.c.l.b16 %v59
  %v124 = vunpack.c.l.b16 %v60
  %v125 = vunpack.c.l.b16 %v61
  %v126 = vunpack.c.l.b16 %v62
  %v127 = vunpack.c.l.b16 %v63
  %v128 = vunpack.c.l.b16 %v64
  %v129 = vunpack.c.l.b16 %v65
  %v130 = vunpack.c.l.b16 %v66
  %v131 = vunpack.c.l.b16 %v67
  %v132 = vunpack.c.l.b16 %v68
  %v133 = vunpack.c.l.b16 %v69
  %v134 = vpack.c.b16 %v119, %v118
  %v135 = vpack.c.b16 %v121, %v120
  %v136 = vpack.c.b16 %v123, %v122
  %v137 = vpack.c.b16 %v125, %v124
  %v138 = vpack.c.b16 %v127, %v126
  %v139 = vpack.c.b16 %v129, %v128
  %v140 = vpack.c.b16 %v131, %v130
  %v141 = vpack.c.b16 %v133, %v132
  %v158 = vunpack.c.l.b16 %v86
  %v159 = vunpack.c.l.b16 %v87
  %v160 = vunpack.c.l.b16 %v88
  %v161 = vunpack.c.l.b16 %v89
  %v162 = vunpack.c.l.b16 %v90
  %v163 = vunpack.c.l.b16 %v91
  %v164 = vunpack.c.l.b16 %v92
  %v165 = vunpack.c.l.b16 %v93
  %v166 = vunpack.c.l.b16 %v94
  %v167 = vunpack.c.l.b16 %v95
  %v168 = vunpack.c.l.b16 %v96
  %v169 = vunpack.c.l.b16 %v97
  %v170 = vunpack.c.l.b16 %v98
  %v171 = vunpack.c.l.b16 %v99
  %v172 = vunpack.c.l.b16 %v100
  %v173 = vunpack.c.l.b16 %v101
  %v174 = vpack.c.b16 %v159, %v158
  %v175 = vpack.c.b16 %v161, %v160
  %v176 = vpack.c.b16 %v163, %v162
  %v177 = vpack.c.b16 %v165, %v164
  %v178 = vpack.c.b16 %v167, %v166
  %v179 = vpack.c.b16 %v169, %v168
  %v180 = vpack.c.b16 %v171, %v170
  %v181 = vpack.c.b16 %v173, %v172
  %182 = vrot.lane.b32.xlu0 %v174, 16
  %v183 = vpop.permute.xlu0 %182
  %184 = vrot.lane.b32.xlu0 %v175, 16
  %v185 = vpop.permute.xlu0 %184
  %186 = vrot.lane.b32.xlu0 %v176, 16
  %v187 = vpop.permute.xlu0 %186
  %188 = vrot.lane.b32.xlu0 %v177, 16
  %v189 = vpop.permute.xlu0 %188
  %190 = vrot.lane.b32.xlu0 %v178, 16
  %v191 = vpop.permute.xlu0 %190
  %192 = vrot.lane.b32.xlu0 %v179, 16
  %v193 = vpop.permute.xlu0 %192
  %194 = vrot.lane.b32.xlu0 %v180, 16
  %v195 = vpop.permute.xlu0 %194
  %196 = vrot.lane.b32.xlu0 %v181, 16
  %v197 = vpop.permute.xlu0 %196
  %vm198 = vcmask 130048
  %v201 = vsel %vm198, %v134, %v183
  %v204 = vsel %vm198, %v135, %v185
  %v207 = vsel %vm198, %v136, %v187
  %v210 = vsel %vm198, %v137, %v189
  %v213 = vsel %vm198, %v138, %v191
  %v216 = vsel %vm198, %v139, %v193
  %v219 = vsel %vm198, %v140, %v195
  %v222 = vsel %vm198, %v141, %v197
  %v223 = vld [vmem:[%s2] sm:$0xf]
  %v224 = vld [vmem:[%s2 + $0x4] sm:$0xf]
  %v225 = vld [vmem:[%s2 + $0x8] sm:$0xf]
  %v226 = vld [vmem:[%s2 + $0xc] sm:$0xf]
  %v227 = vld [vmem:[%s3] sm:$0x1]
  %v229 = vperm.slane %v227, 0
  %v235 = vunpack.c.l.b16 %v223
  %v236 = vunpack.c.l.b16 %v224
  %v237 = vunpack.c.l.b16 %v225
  %v238 = vunpack.c.l.b16 %v226
  %v239 = vpack.c.b16 %v236, %v235
  %v240 = vpack.c.b16 %v238, %v237
  %vm243 = vcmask 261120
  %v244 = vsel %vm243, %v201, 0
  %v246 = vsel %vm243, %v204, 0
  %v248 = vsel %vm243, %v207, 0
  %v250 = vsel %vm243, %v210, 0
  %v252 = vsel %vm243, %v213, 0
  %v254 = vsel %vm243, %v216, 0
  %v256 = vsel %vm243, %v219, 0
  %v258 = vsel %vm243, %v222, 0
  %260 = vmatpush.bf16.msra.mxu0 0
  %261 = vmatpush.bf16.msra.mxu0 0
  %262 = vmatpush.bf16.msra.mxu0 0
  %263 = vmatpush.bf16.msra.mxu0 0
  %264 = vmatpush.bf16.msra.mxu0 0
  %265 = vmatpush.bf16.msra.mxu0 0
  %266 = vmatpush.bf16.msra.mxu0 %v240
  %267 = vmatpush.bf16.msra.mxu0 %v239
  %268 = vmatmul.bf16.gmra.mxu0 %v244
  %v269 = vpop.f32.mrf.mxu0
  %v270 = vadd.f32 %v229, %v269
  %v271 = vpop.f32.mrf.mxu0
  %v272 = vadd.f32 %v229, %v271
  %273 = vmatmul.bf16.gmra.mxu0 %v246
  %v274 = vpop.f32.mrf.mxu0
  %v275 = vadd.f32 %v229, %v274
  %v276 = vpop.f32.mrf.mxu0
  %v277 = vadd.f32 %v229, %v276
  %278 = vmatmul.bf16.gmra.mxu0 %v248
  %v279 = vpop.f32.mrf.mxu0
  %v280 = vadd.f32 %v229, %v279
  %v281 = vpop.f32.mrf.mxu0
  %v282 = vadd.f32 %v229, %v281
  %283 = vmatmul.bf16.gmra.mxu0 %v250
  %v284 = vpop.f32.mrf.mxu0
  %v285 = vadd.f32 %v229, %v284
  %v286 = vpop.f32.mrf.mxu0
  %v287 = vadd.f32 %v229, %v286
  %288 = vmatmul.bf16.gmra.mxu0 %v252
  %v289 = vpop.f32.mrf.mxu0
  %v290 = vadd.f32 %v229, %v289
  %v291 = vpop.f32.mrf.mxu0
  %v292 = vadd.f32 %v229, %v291
  %293 = vmatmul.bf16.gmra.mxu0 %v254
  %v294 = vpop.f32.mrf.mxu0
  %v295 = vadd.f32 %v229, %v294
  %v296 = vpop.f32.mrf.mxu0
  %v297 = vadd.f32 %v229, %v296
  %298 = vmatmul.bf16.gmra.mxu0 %v256
  %v299 = vpop.f32.mrf.mxu0
  %v300 = vadd.f32 %v229, %v299
  %v301 = vpop.f32.mrf.mxu0
  %v302 = vadd.f32 %v229, %v301
  %303 = vmatmul.bf16.gmra.mxu0 %v258
  %v304 = vpop.f32.mrf.mxu0
  %v305 = vadd.f32 %v229, %v304
  %v306 = vpop.f32.mrf.mxu0
  %v307 = vadd.f32 %v229, %v306
  %308 = vdwg.mxu0
  %v309 = vmul.f32 %v270, 0.5
  %v310 = vmul.f32 %v272, 0.5
  %v311 = vmul.f32 %v275, 0.5
  %v312 = vmul.f32 %v277, 0.5
  %v313 = vmul.f32 %v280, 0.5
  %v314 = vmul.f32 %v282, 0.5
  %v315 = vmul.f32 %v285, 0.5
  %v316 = vmul.f32 %v287, 0.5
  %v317 = vmul.f32 %v290, 0.5
  %v318 = vmul.f32 %v292, 0.5
  %v319 = vmul.f32 %v295, 0.5
  %v320 = vmul.f32 %v297, 0.5
  %v321 = vmul.f32 %v300, 0.5
  %v322 = vmul.f32 %v302, 0.5
  %v323 = vmul.f32 %v305, 0.5
  %v324 = vmul.f32 %v307, 0.5
  %v325 = vmul.f32 %v270, 0.70710677
  %v326 = vmul.f32 %v272, 0.70710677
  %v327 = vmul.f32 %v275, 0.70710677
  %v328 = vmul.f32 %v277, 0.70710677
  %v329 = vmul.f32 %v280, 0.70710677
  %v330 = vmul.f32 %v282, 0.70710677
  %v331 = vmul.f32 %v285, 0.70710677
  %v332 = vmul.f32 %v287, 0.70710677
  %v333 = vmul.f32 %v290, 0.70710677
  %v334 = vmul.f32 %v292, 0.70710677
  %v335 = vmul.f32 %v295, 0.70710677
  %v336 = vmul.f32 %v297, 0.70710677
  %v337 = vmul.f32 %v300, 0.70710677
  %v338 = vmul.f32 %v302, 0.70710677
  %v339 = vmul.f32 %v305, 0.70710677
  %v340 = vmul.f32 %v307, 0.70710677
  %v341 = vmul.f32 %v325, %v325
  %v342 = vmin.f32 16.0, %v341
  %v343 = vmul.f32 %v342, 2.1237322e-06
  %v344 = vadd.f32 %v343, 0.00028619796
  %v345 = vmul.f32 %v342, %v344
  %v346 = vadd.f32 %v345, 0.0036580483
  %v347 = vmul.f32 %v342, %v346
  %v348 = vadd.f32 %v347, 0.05243302
  %v349 = vmul.f32 %v342, %v348
  %v350 = vadd.f32 %v349, 0.18741608
  %v351 = vmul.f32 %v342, %v350
  %v352 = vadd.f32 %v351, 1.1283791
  %v353 = vmul.f32 %v325, %v352
  %v354 = vmul.f32 %v342, 3.8918573e-05
  %v355 = vadd.f32 %v354, 0.001143296
  %v356 = vmul.f32 %v342, %v355
  %v357 = vadd.f32 %v356, 0.014752088
  %v358 = vmul.f32 %v342, %v357
  %v359 = vadd.f32 %v358, 0.112945676
  %v360 = vmul.f32 %v342, %v359
  %v361 = vadd.f32 %v360, 0.4994258
  %v362 = vmul.f32 %v342, %v361
  %v363 = vadd.f32 %v362, 1.0
  %v364 = vrcp.pop %v363
  %v365 = vmul.f32 %v363, %v364
  %v366 = vsub.f32 1.0, %v365
  %v367 = vmul.f32 %v364, %v366
  %v368 = vadd.f32 %v364, %v367
  %vm369 = vweird.f32 %v363
  %vm370 = vweird.f32 %v364
  %vm371 = vmor %vm369, %vm370
  %v372 = vsel %vm371, %v364, %v368
  %v373 = vand.u32 2147483647, %v363
  %vm374 = vcmp.eq.f32.partialorder %v373, 8.507059e+37
  %v375 = vand.u32 %v363, 2147483648
  %v376 = vor.u32 1.1754944e-38, %v375
  %v377 = vsel %vm374, %v376, %v372
  %v378 = vmul.f32 %v353, %v377
  %v379 = vmin.f32 %v378, 1.0
  %v380 = vmax.f32 %v379, -1.0
  %v381 = vmul.f32 %v326, %v326
  %v382 = vmin.f32 16.0, %v381
  %v383 = vmul.f32 %v382, 2.1237322e-06
  %v384 = vadd.f32 %v383, 0.00028619796
  %v385 = vmul.f32 %v382, %v384
  %v386 = vadd.f32 %v385, 0.0036580483
  %v387 = vmul.f32 %v382, %v386
  %v388 = vadd.f32 %v387, 0.05243302
  %v389 = vmul.f32 %v382, %v388
  %v390 = vadd.f32 %v389, 0.18741608
  %v391 = vmul.f32 %v382, %v390
  %v392 = vadd.f32 %v391, 1.1283791
  %v393 = vmul.f32 %v326, %v392
  %v394 = vmul.f32 %v382, 3.8918573e-05
  %v395 = vadd.f32 %v394, 0.001143296
  %v396 = vmul.f32 %v382, %v395
  %v397 = vadd.f32 %v396, 0.014752088
  %v398 = vmul.f32 %v382, %v397
  %v399 = vadd.f32 %v398, 0.112945676
  %v400 = vmul.f32 %v382, %v399
  %v401 = vadd.f32 %v400, 0.4994258
  %v402 = vmul.f32 %v382, %v401
  %v403 = vadd.f32 %v402, 1.0
  %v404 = vrcp.pop %v403
  %v405 = vmul.f32 %v403, %v404
  %v406 = vsub.f32 1.0, %v405
  %v407 = vmul.f32 %v404, %v406
  %v408 = vadd.f32 %v404, %v407
  %vm409 = vweird.f32 %v403
  %vm410 = vweird.f32 %v404
  %vm411 = vmor %vm409, %vm410
  %v412 = vsel %vm411, %v404, %v408
  %v413 = vand.u32 2147483647, %v403
  %vm414 = vcmp.eq.f32.partialorder %v413, 8.507059e+37
  %v415 = vand.u32 %v403, 2147483648
  %v416 = vor.u32 1.1754944e-38, %v415
  %v417 = vsel %vm414, %v416, %v412
  %v418 = vmul.f32 %v393, %v417
  %v419 = vmin.f32 %v418, 1.0
  %v420 = vmax.f32 %v419, -1.0
  %v421 = vmul.f32 %v327, %v327
  %v422 = vmin.f32 16.0, %v421
  %v423 = vmul.f32 %v422, 2.1237322e-06
  %v424 = vadd.f32 %v423, 0.00028619796
  %v425 = vmul.f32 %v422, %v424
  %v426 = vadd.f32 %v425, 0.0036580483
  %v427 = vmul.f32 %v422, %v426
  %v428 = vadd.f32 %v427, 0.05243302
  %v429 = vmul.f32 %v422, %v428
  %v430 = vadd.f32 %v429, 0.18741608
  %v431 = vmul.f32 %v422, %v430
  %v432 = vadd.f32 %v431, 1.1283791
  %v433 = vmul.f32 %v327, %v432
  %v434 = vmul.f32 %v422, 3.8918573e-05
  %v435 = vadd.f32 %v434, 0.001143296
  %v436 = vmul.f32 %v422, %v435
  %v437 = vadd.f32 %v436, 0.014752088
  %v438 = vmul.f32 %v422, %v437
  %v439 = vadd.f32 %v438, 0.112945676
  %v440 = vmul.f32 %v422, %v439
  %v441 = vadd.f32 %v440, 0.4994258
  %v442 = vmul.f32 %v422, %v441
  %v443 = vadd.f32 %v442, 1.0
  %v444 = vrcp.pop %v443
  %v445 = vmul.f32 %v443, %v444
  %v446 = vsub.f32 1.0, %v445
  %v447 = vmul.f32 %v444, %v446
  %v448 = vadd.f32 %v444, %v447
  %vm449 = vweird.f32 %v443
  %vm450 = vweird.f32 %v444
  %vm451 = vmor %vm449, %vm450
  %v452 = vsel %vm451, %v444, %v448
  %v453 = vand.u32 2147483647, %v443
  %vm454 = vcmp.eq.f32.partialorder %v453, 8.507059e+37
  %v455 = vand.u32 %v443, 2147483648
  %v456 = vor.u32 1.1754944e-38, %v455
  %v457 = vsel %vm454, %v456, %v452
  %v458 = vmul.f32 %v433, %v457
  %v459 = vmin.f32 %v458, 1.0
  %v460 = vmax.f32 %v459, -1.0
  %v461 = vmul.f32 %v328, %v328
  %v462 = vmin.f32 16.0, %v461
  %v463 = vmul.f32 %v462, 2.1237322e-06
  %v464 = vadd.f32 %v463, 0.00028619796
  %v465 = vmul.f32 %v462, %v464
  %v466 = vadd.f32 %v465, 0.0036580483
  %v467 = vmul.f32 %v462, %v466
  %v468 = vadd.f32 %v467, 0.05243302
  %v469 = vmul.f32 %v462, %v468
  %v470 = vadd.f32 %v469, 0.18741608
  %v471 = vmul.f32 %v462, %v470
  %v472 = vadd.f32 %v471, 1.1283791
  %v473 = vmul.f32 %v328, %v472
  %v474 = vmul.f32 %v462, 3.8918573e-05
  %v475 = vadd.f32 %v474, 0.001143296
  %v476 = vmul.f32 %v462, %v475
  %v477 = vadd.f32 %v476, 0.014752088
  %v478 = vmul.f32 %v462, %v477
  %v479 = vadd.f32 %v478, 0.112945676
  %v480 = vmul.f32 %v462, %v479
  %v481 = vadd.f32 %v480, 0.4994258
  %v482 = vmul.f32 %v462, %v481
  %v483 = vadd.f32 %v482, 1.0
  %v484 = vrcp.pop %v483
  %v485 = vmul.f32 %v483, %v484
  %v486 = vsub.f32 1.0, %v485
  %v487 = vmul.f32 %v484, %v486
  %v488 = vadd.f32 %v484, %v487
  %vm489 = vweird.f32 %v483
  %vm490 = vweird.f32 %v484
  %vm491 = vmor %vm489, %vm490
  %v492 = vsel %vm491, %v484, %v488
  %v493 = vand.u32 2147483647, %v483
  %vm494 = vcmp.eq.f32.partialorder %v493, 8.507059e+37
  %v495 = vand.u32 %v483, 2147483648
  %v496 = vor.u32 1.1754944e-38, %v495
  %v497 = vsel %vm494, %v496, %v492
  %v498 = vmul.f32 %v473, %v497
  %v499 = vmin.f32 %v498, 1.0
  %v500 = vmax.f32 %v499, -1.0
  %v501 = vmul.f32 %v329, %v329
  %v502 = vmin.f32 16.0, %v501
  %v503 = vmul.f32 %v502, 2.1237322e-06
  %v504 = vadd.f32 %v503, 0.00028619796
  %v505 = vmul.f32 %v502, %v504
  %v506 = vadd.f32 %v505, 0.0036580483
  %v507 = vmul.f32 %v502, %v506
  %v508 = vadd.f32 %v507, 0.05243302
  %v509 = vmul.f32 %v502, %v508
  %v510 = vadd.f32 %v509, 0.18741608
  %v511 = vmul.f32 %v502, %v510
  %v512 = vadd.f32 %v511, 1.1283791
  %v513 = vmul.f32 %v329, %v512
  %v514 = vmul.f32 %v502, 3.8918573e-05
  %v515 = vadd.f32 %v514, 0.001143296
  %v516 = vmul.f32 %v502, %v515
  %v517 = vadd.f32 %v516, 0.014752088
  %v518 = vmul.f32 %v502, %v517
  %v519 = vadd.f32 %v518, 0.112945676
  %v520 = vmul.f32 %v502, %v519
  %v521 = vadd.f32 %v520, 0.4994258
  %v522 = vmul.f32 %v502, %v521
  %v523 = vadd.f32 %v522, 1.0
  %v524 = vrcp.pop %v523
  %v525 = vmul.f32 %v523, %v524
  %v526 = vsub.f32 1.0, %v525
  %v527 = vmul.f32 %v524, %v526
  %v528 = vadd.f32 %v524, %v527
  %vm529 = vweird.f32 %v523
  %vm530 = vweird.f32 %v524
  %vm531 = vmor %vm529, %vm530
  %v532 = vsel %vm531, %v524, %v528
  %v533 = vand.u32 2147483647, %v523
  %vm534 = vcmp.eq.f32.partialorder %v533, 8.507059e+37
  %v535 = vand.u32 %v523, 2147483648
  %v536 = vor.u32 1.1754944e-38, %v535
  %v537 = vsel %vm534, %v536, %v532
  %v538 = vmul.f32 %v513, %v537
  %v539 = vmin.f32 %v538, 1.0
  %v540 = vmax.f32 %v539, -1.0
  %v541 = vmul.f32 %v330, %v330
  %v542 = vmin.f32 16.0, %v541
  %v543 = vmul.f32 %v542, 2.1237322e-06
  %v544 = vadd.f32 %v543, 0.00028619796
  %v545 = vmul.f32 %v542, %v544
  %v546 = vadd.f32 %v545, 0.0036580483
  %v547 = vmul.f32 %v542, %v546
  %v548 = vadd.f32 %v547, 0.05243302
  %v549 = vmul.f32 %v542, %v548
  %v550 = vadd.f32 %v549, 0.18741608
  %v551 = vmul.f32 %v542, %v550
  %v552 = vadd.f32 %v551, 1.1283791
  %v553 = vmul.f32 %v330, %v552
  %v554 = vmul.f32 %v542, 3.8918573e-05
  %v555 = vadd.f32 %v554, 0.001143296
  %v556 = vmul.f32 %v542, %v555
  %v557 = vadd.f32 %v556, 0.014752088
  %v558 = vmul.f32 %v542, %v557
  %v559 = vadd.f32 %v558, 0.112945676
  %v560 = vmul.f32 %v542, %v559
  %v561 = vadd.f32 %v560, 0.4994258
  %v562 = vmul.f32 %v542, %v561
  %v563 = vadd.f32 %v562, 1.0
  %v564 = vrcp.pop %v563
  %v565 = vmul.f32 %v563, %v564
  %v566 = vsub.f32 1.0, %v565
  %v567 = vmul.f32 %v564, %v566
  %v568 = vadd.f32 %v564, %v567
  %vm569 = vweird.f32 %v563
  %vm570 = vweird.f32 %v564
  %vm571 = vmor %vm569, %vm570
  %v572 = vsel %vm571, %v564, %v568
  %v573 = vand.u32 2147483647, %v563
  %vm574 = vcmp.eq.f32.partialorder %v573, 8.507059e+37
  %v575 = vand.u32 %v563, 2147483648
  %v576 = vor.u32 1.1754944e-38, %v575
  %v577 = vsel %vm574, %v576, %v572
  %v578 = vmul.f32 %v553, %v577
  %v579 = vmin.f32 %v578, 1.0
  %v580 = vmax.f32 %v579, -1.0
  %v581 = vmul.f32 %v331, %v331
  %v582 = vmin.f32 16.0, %v581
  %v583 = vmul.f32 %v582, 2.1237322e-06
  %v584 = vadd.f32 %v583, 0.00028619796
  %v585 = vmul.f32 %v582, %v584
  %v586 = vadd.f32 %v585, 0.0036580483
  %v587 = vmul.f32 %v582, %v586
  %v588 = vadd.f32 %v587, 0.05243302
  %v589 = vmul.f32 %v582, %v588
  %v590 = vadd.f32 %v589, 0.18741608
  %v591 = vmul.f32 %v582, %v590
  %v592 = vadd.f32 %v591, 1.1283791
  %v593 = vmul.f32 %v331, %v592
  %v594 = vmul.f32 %v582, 3.8918573e-05
  %v595 = vadd.f32 %v594, 0.001143296
  %v596 = vmul.f32 %v582, %v595
  %v597 = vadd.f32 %v596, 0.014752088
  %v598 = vmul.f32 %v582, %v597
  %v599 = vadd.f32 %v598, 0.112945676
  %v600 = vmul.f32 %v582, %v599
  %v601 = vadd.f32 %v600, 0.4994258
  %v602 = vmul.f32 %v582, %v601
  %v603 = vadd.f32 %v602, 1.0
  %v604 = vrcp.pop %v603
  %v605 = vmul.f32 %v603, %v604
  %v606 = vsub.f32 1.0, %v605
  %v607 = vmul.f32 %v604, %v606
  %v608 = vadd.f32 %v604, %v607
  %vm609 = vweird.f32 %v603
  %vm610 = vweird.f32 %v604
  %vm611 = vmor %vm609, %vm610
  %v612 = vsel %vm611, %v604, %v608
  %v613 = vand.u32 2147483647, %v603
  %vm614 = vcmp.eq.f32.partialorder %v613, 8.507059e+37
  %v615 = vand.u32 %v603, 2147483648
  %v616 = vor.u32 1.1754944e-38, %v615
  %v617 = vsel %vm614, %v616, %v612
  %v618 = vmul.f32 %v593, %v617
  %v619 = vmin.f32 %v618, 1.0
  %v620 = vmax.f32 %v619, -1.0
  %v621 = vmul.f32 %v332, %v332
  %v622 = vmin.f32 16.0, %v621
  %v623 = vmul.f32 %v622, 2.1237322e-06
  %v624 = vadd.f32 %v623, 0.00028619796
  %v625 = vmul.f32 %v622, %v624
  %v626 = vadd.f32 %v625, 0.0036580483
  %v627 = vmul.f32 %v622, %v626
  %v628 = vadd.f32 %v627, 0.05243302
  %v629 = vmul.f32 %v622, %v628
  %v630 = vadd.f32 %v629, 0.18741608
  %v631 = vmul.f32 %v622, %v630
  %v632 = vadd.f32 %v631, 1.1283791
  %v633 = vmul.f32 %v332, %v632
  %v634 = vmul.f32 %v622, 3.8918573e-05
  %v635 = vadd.f32 %v634, 0.001143296
  %v636 = vmul.f32 %v622, %v635
  %v637 = vadd.f32 %v636, 0.014752088
  %v638 = vmul.f32 %v622, %v637
  %v639 = vadd.f32 %v638, 0.112945676
  %v640 = vmul.f32 %v622, %v639
  %v641 = vadd.f32 %v640, 0.4994258
  %v642 = vmul.f32 %v622, %v641
  %v643 = vadd.f32 %v642, 1.0
  %v644 = vrcp.pop %v643
  %v645 = vmul.f32 %v643, %v644
  %v646 = vsub.f32 1.0, %v645
  %v647 = vmul.f32 %v644, %v646
  %v648 = vadd.f32 %v644, %v647
  %vm649 = vweird.f32 %v643
  %vm650 = vweird.f32 %v644
  %vm651 = vmor %vm649, %vm650
  %v652 = vsel %vm651, %v644, %v648
  %v653 = vand.u32 2147483647, %v643
  %vm654 = vcmp.eq.f32.partialorder %v653, 8.507059e+37
  %v655 = vand.u32 %v643, 2147483648
  %v656 = vor.u32 1.1754944e-38, %v655
  %v657 = vsel %vm654, %v656, %v652
  %v658 = vmul.f32 %v633, %v657
  %v659 = vmin.f32 %v658, 1.0
  %v660 = vmax.f32 %v659, -1.0
  %v661 = vmul.f32 %v333, %v333
  %v662 = vmin.f32 16.0, %v661
  %v663 = vmul.f32 %v662, 2.1237322e-06
  %v664 = vadd.f32 %v663, 0.00028619796
  %v665 = vmul.f32 %v662, %v664
  %v666 = vadd.f32 %v665, 0.0036580483
  %v667 = vmul.f32 %v662, %v666
  %v668 = vadd.f32 %v667, 0.05243302
  %v669 = vmul.f32 %v662, %v668
  %v670 = vadd.f32 %v669, 0.18741608
  %v671 = vmul.f32 %v662, %v670
  %v672 = vadd.f32 %v671, 1.1283791
  %v673 = vmul.f32 %v333, %v672
  %v674 = vmul.f32 %v662, 3.8918573e-05
  %v675 = vadd.f32 %v674, 0.001143296
  %v676 = vmul.f32 %v662, %v675
  %v677 = vadd.f32 %v676, 0.014752088
  %v678 = vmul.f32 %v662, %v677
  %v679 = vadd.f32 %v678, 0.112945676
  %v680 = vmul.f32 %v662, %v679
  %v681 = vadd.f32 %v680, 0.4994258
  %v682 = vmul.f32 %v662, %v681
  %v683 = vadd.f32 %v682, 1.0
  %v684 = vrcp.pop %v683
  %v685 = vmul.f32 %v683, %v684
  %v686 = vsub.f32 1.0, %v685
  %v687 = vmul.f32 %v684, %v686
  %v688 = vadd.f32 %v684, %v687
  %vm689 = vweird.f32 %v683
  %vm690 = vweird.f32 %v684
  %vm691 = vmor %vm689, %vm690
  %v692 = vsel %vm691, %v684, %v688
  %v693 = vand.u32 2147483647, %v683
  %vm694 = vcmp.eq.f32.partialorder %v693, 8.507059e+37
  %v695 = vand.u32 %v683, 2147483648
  %v696 = vor.u32 1.1754944e-38, %v695
  %v697 = vsel %vm694, %v696, %v692
  %v698 = vmul.f32 %v673, %v697
  %v699 = vmin.f32 %v698, 1.0
  %v700 = vmax.f32 %v699, -1.0
  %v701 = vmul.f32 %v334, %v334
  %v702 = vmin.f32 16.0, %v701
  %v703 = vmul.f32 %v702, 2.1237322e-06
  %v704 = vadd.f32 %v703, 0.00028619796
  %v705 = vmul.f32 %v702, %v704
  %v706 = vadd.f32 %v705, 0.0036580483
  %v707 = vmul.f32 %v702, %v706
  %v708 = vadd.f32 %v707, 0.05243302
  %v709 = vmul.f32 %v702, %v708
  %v710 = vadd.f32 %v709, 0.18741608
  %v711 = vmul.f32 %v702, %v710
  %v712 = vadd.f32 %v711, 1.1283791
  %v713 = vmul.f32 %v334, %v712
  %v714 = vmul.f32 %v702, 3.8918573e-05
  %v715 = vadd.f32 %v714, 0.001143296
  %v716 = vmul.f32 %v702, %v715
  %v717 = vadd.f32 %v716, 0.014752088
  %v718 = vmul.f32 %v702, %v717
  %v719 = vadd.f32 %v718, 0.112945676
  %v720 = vmul.f32 %v702, %v719
  %v721 = vadd.f32 %v720, 0.4994258
  %v722 = vmul.f32 %v702, %v721
  %v723 = vadd.f32 %v722, 1.0
  %v724 = vrcp.pop %v723
  %v725 = vmul.f32 %v723, %v724
  %v726 = vsub.f32 1.0, %v725
  %v727 = vmul.f32 %v724, %v726
  %v728 = vadd.f32 %v724, %v727
  %vm729 = vweird.f32 %v723
  %vm730 = vweird.f32 %v724
  %vm731 = vmor %vm729, %vm730
  %v732 = vsel %vm731, %v724, %v728
  %v733 = vand.u32 2147483647, %v723
  %vm734 = vcmp.eq.f32.partialorder %v733, 8.507059e+37
  %v735 = vand.u32 %v723, 2147483648
  %v736 = vor.u32 1.1754944e-38, %v735
  %v737 = vsel %vm734, %v736, %v732
  %v738 = vmul.f32 %v713, %v737
  %v739 = vmin.f32 %v738, 1.0
  %v740 = vmax.f32 %v739, -1.0
  %v741 = vmul.f32 %v335, %v335
  %v742 = vmin.f32 16.0, %v741
  %v743 = vmul.f32 %v742, 2.1237322e-06
  %v744 = vadd.f32 %v743, 0.00028619796
  %v745 = vmul.f32 %v742, %v744
  %v746 = vadd.f32 %v745, 0.0036580483
  %v747 = vmul.f32 %v742, %v746
  %v748 = vadd.f32 %v747, 0.05243302
  %v749 = vmul.f32 %v742, %v748
  %v750 = vadd.f32 %v749, 0.18741608
  %v751 = vmul.f32 %v742, %v750
  %v752 = vadd.f32 %v751, 1.1283791
  %v753 = vmul.f32 %v335, %v752
  %v754 = vmul.f32 %v742, 3.8918573e-05
  %v755 = vadd.f32 %v754, 0.001143296
  %v756 = vmul.f32 %v742, %v755
  %v757 = vadd.f32 %v756, 0.014752088
  %v758 = vmul.f32 %v742, %v757
  %v759 = vadd.f32 %v758, 0.112945676
  %v760 = vmul.f32 %v742, %v759
  %v761 = vadd.f32 %v760, 0.4994258
  %v762 = vmul.f32 %v742, %v761
  %v763 = vadd.f32 %v762, 1.0
  %v764 = vrcp.pop %v763
  %v765 = vmul.f32 %v763, %v764
  %v766 = vsub.f32 1.0, %v765
  %v767 = vmul.f32 %v764, %v766
  %v768 = vadd.f32 %v764, %v767
  %vm769 = vweird.f32 %v763
  %vm770 = vweird.f32 %v764
  %vm771 = vmor %vm769, %vm770
  %v772 = vsel %vm771, %v764, %v768
  %v773 = vand.u32 2147483647, %v763
  %vm774 = vcmp.eq.f32.partialorder %v773, 8.507059e+37
  %v775 = vand.u32 %v763, 2147483648
  %v776 = vor.u32 1.1754944e-38, %v775
  %v777 = vsel %vm774, %v776, %v772
  %v778 = vmul.f32 %v753, %v777
  %v779 = vmin.f32 %v778, 1.0
  %v780 = vmax.f32 %v779, -1.0
  %v781 = vmul.f32 %v336, %v336
  %v782 = vmin.f32 16.0, %v781
  %v783 = vmul.f32 %v782, 2.1237322e-06
  %v784 = vadd.f32 %v783, 0.00028619796
  %v785 = vmul.f32 %v782, %v784
  %v786 = vadd.f32 %v785, 0.0036580483
  %v787 = vmul.f32 %v782, %v786
  %v788 = vadd.f32 %v787, 0.05243302
  %v789 = vmul.f32 %v782, %v788
  %v790 = vadd.f32 %v789, 0.18741608
  %v791 = vmul.f32 %v782, %v790
  %v792 = vadd.f32 %v791, 1.1283791
  %v793 = vmul.f32 %v336, %v792
  %v794 = vmul.f32 %v782, 3.8918573e-05
  %v795 = vadd.f32 %v794, 0.001143296
  %v796 = vmul.f32 %v782, %v795
  %v797 = vadd.f32 %v796, 0.014752088
  %v798 = vmul.f32 %v782, %v797
  %v799 = vadd.f32 %v798, 0.112945676
  %v800 = vmul.f32 %v782, %v799
  %v801 = vadd.f32 %v800, 0.4994258
  %v802 = vmul.f32 %v782, %v801
  %v803 = vadd.f32 %v802, 1.0
  %v804 = vrcp.pop %v803
  %v805 = vmul.f32 %v803, %v804
  %v806 = vsub.f32 1.0, %v805
  %v807 = vmul.f32 %v804, %v806
  %v808 = vadd.f32 %v804, %v807
  %vm809 = vweird.f32 %v803
  %vm810 = vweird.f32 %v804
  %vm811 = vmor %vm809, %vm810
  %v812 = vsel %vm811, %v804, %v808
  %v813 = vand.u32 2147483647, %v803
  %vm814 = vcmp.eq.f32.partialorder %v813, 8.507059e+37
  %v815 = vand.u32 %v803, 2147483648
  %v816 = vor.u32 1.1754944e-38, %v815
  %v817 = vsel %vm814, %v816, %v812
  %v818 = vmul.f32 %v793, %v817
  %v819 = vmin.f32 %v818, 1.0
  %v820 = vmax.f32 %v819, -1.0
  %v821 = vmul.f32 %v337, %v337
  %v822 = vmin.f32 16.0, %v821
  %v823 = vmul.f32 %v822, 2.1237322e-06
  %v824 = vadd.f32 %v823, 0.00028619796
  %v825 = vmul.f32 %v822, %v824
  %v826 = vadd.f32 %v825, 0.0036580483
  %v827 = vmul.f32 %v822, %v826
  %v828 = vadd.f32 %v827, 0.05243302
  %v829 = vmul.f32 %v822, %v828
  %v830 = vadd.f32 %v829, 0.18741608
  %v831 = vmul.f32 %v822, %v830
  %v832 = vadd.f32 %v831, 1.1283791
  %v833 = vmul.f32 %v337, %v832
  %v834 = vmul.f32 %v822, 3.8918573e-05
  %v835 = vadd.f32 %v834, 0.001143296
  %v836 = vmul.f32 %v822, %v835
  %v837 = vadd.f32 %v836, 0.014752088
  %v838 = vmul.f32 %v822, %v837
  %v839 = vadd.f32 %v838, 0.112945676
  %v840 = vmul.f32 %v822, %v839
  %v841 = vadd.f32 %v840, 0.4994258
  %v842 = vmul.f32 %v822, %v841
  %v843 = vadd.f32 %v842, 1.0
  %v844 = vrcp.pop %v843
  %v845 = vmul.f32 %v843, %v844
  %v846 = vsub.f32 1.0, %v845
  %v847 = vmul.f32 %v844, %v846
  %v848 = vadd.f32 %v844, %v847
  %vm849 = vweird.f32 %v843
  %vm850 = vweird.f32 %v844
  %vm851 = vmor %vm849, %vm850
  %v852 = vsel %vm851, %v844, %v848
  %v853 = vand.u32 2147483647, %v843
  %vm854 = vcmp.eq.f32.partialorder %v853, 8.507059e+37
  %v855 = vand.u32 %v843, 2147483648
  %v856 = vor.u32 1.1754944e-38, %v855
  %v857 = vsel %vm854, %v856, %v852
  %v858 = vmul.f32 %v833, %v857
  %v859 = vmin.f32 %v858, 1.0
  %v860 = vmax.f32 %v859, -1.0
  %v861 = vmul.f32 %v338, %v338
  %v862 = vmin.f32 16.0, %v861
  %v863 = vmul.f32 %v862, 2.1237322e-06
  %v864 = vadd.f32 %v863, 0.00028619796
  %v865 = vmul.f32 %v862, %v864
  %v866 = vadd.f32 %v865, 0.0036580483
  %v867 = vmul.f32 %v862, %v866
  %v868 = vadd.f32 %v867, 0.05243302
  %v869 = vmul.f32 %v862, %v868
  %v870 = vadd.f32 %v869, 0.18741608
  %v871 = vmul.f32 %v862, %v870
  %v872 = vadd.f32 %v871, 1.1283791
  %v873 = vmul.f32 %v338, %v872
  %v874 = vmul.f32 %v862, 3.8918573e-05
  %v875 = vadd.f32 %v874, 0.001143296
  %v876 = vmul.f32 %v862, %v875
  %v877 = vadd.f32 %v876, 0.014752088
  %v878 = vmul.f32 %v862, %v877
  %v879 = vadd.f32 %v878, 0.112945676
  %v880 = vmul.f32 %v862, %v879
  %v881 = vadd.f32 %v880, 0.4994258
  %v882 = vmul.f32 %v862, %v881
  %v883 = vadd.f32 %v882, 1.0
  %v884 = vrcp.pop %v883
  %v885 = vmul.f32 %v883, %v884
  %v886 = vsub.f32 1.0, %v885
  %v887 = vmul.f32 %v884, %v886
  %v888 = vadd.f32 %v884, %v887
  %vm889 = vweird.f32 %v883
  %vm890 = vweird.f32 %v884
  %vm891 = vmor %vm889, %vm890
  %v892 = vsel %vm891, %v884, %v888
  %v893 = vand.u32 2147483647, %v883
  %vm894 = vcmp.eq.f32.partialorder %v893, 8.507059e+37
  %v895 = vand.u32 %v883, 2147483648
  %v896 = vor.u32 1.1754944e-38, %v895
  %v897 = vsel %vm894, %v896, %v892
  %v898 = vmul.f32 %v873, %v897
  %v899 = vmin.f32 %v898, 1.0
  %v900 = vmax.f32 %v899, -1.0
  %v901 = vmul.f32 %v339, %v339
  %v902 = vmin.f32 16.0, %v901
  %v903 = vmul.f32 %v902, 2.1237322e-06
  %v904 = vadd.f32 %v903, 0.00028619796
  %v905 = vmul.f32 %v902, %v904
  %v906 = vadd.f32 %v905, 0.0036580483
  %v907 = vmul.f32 %v902, %v906
  %v908 = vadd.f32 %v907, 0.05243302
  %v909 = vmul.f32 %v902, %v908
  %v910 = vadd.f32 %v909, 0.18741608
  %v911 = vmul.f32 %v902, %v910
  %v912 = vadd.f32 %v911, 1.1283791
  %v913 = vmul.f32 %v339, %v912
  %v914 = vmul.f32 %v902, 3.8918573e-05
  %v915 = vadd.f32 %v914, 0.001143296
  %v916 = vmul.f32 %v902, %v915
  %v917 = vadd.f32 %v916, 0.014752088
  %v918 = vmul.f32 %v902, %v917
  %v919 = vadd.f32 %v918, 0.112945676
  %v920 = vmul.f32 %v902, %v919
  %v921 = vadd.f32 %v920, 0.4994258
  %v922 = vmul.f32 %v902, %v921
  %v923 = vadd.f32 %v922, 1.0
  %v924 = vrcp.pop %v923
  %v925 = vmul.f32 %v923, %v924
  %v926 = vsub.f32 1.0, %v925
  %v927 = vmul.f32 %v924, %v926
  %v928 = vadd.f32 %v924, %v927
  %vm929 = vweird.f32 %v923
  %vm930 = vweird.f32 %v924
  %vm931 = vmor %vm929, %vm930
  %v932 = vsel %vm931, %v924, %v928
  %v933 = vand.u32 2147483647, %v923
  %vm934 = vcmp.eq.f32.partialorder %v933, 8.507059e+37
  %v935 = vand.u32 %v923, 2147483648
  %v936 = vor.u32 1.1754944e-38, %v935
  %v937 = vsel %vm934, %v936, %v932
  %v938 = vmul.f32 %v913, %v937
  %v939 = vmin.f32 %v938, 1.0
  %v940 = vmax.f32 %v939, -1.0
  %v941 = vmul.f32 %v340, %v340
  %v942 = vmin.f32 16.0, %v941
  %v943 = vmul.f32 %v942, 2.1237322e-06
  %v944 = vadd.f32 %v943, 0.00028619796
  %v945 = vmul.f32 %v942, %v944
  %v946 = vadd.f32 %v945, 0.0036580483
  %v947 = vmul.f32 %v942, %v946
  %v948 = vadd.f32 %v947, 0.05243302
  %v949 = vmul.f32 %v942, %v948
  %v950 = vadd.f32 %v949, 0.18741608
  %v951 = vmul.f32 %v942, %v950
  %v952 = vadd.f32 %v951, 1.1283791
  %v953 = vmul.f32 %v340, %v952
  %v954 = vmul.f32 %v942, 3.8918573e-05
  %v955 = vadd.f32 %v954, 0.001143296
  %v956 = vmul.f32 %v942, %v955
  %v957 = vadd.f32 %v956, 0.014752088
  %v958 = vmul.f32 %v942, %v957
  %v959 = vadd.f32 %v958, 0.112945676
  %v960 = vmul.f32 %v942, %v959
  %v961 = vadd.f32 %v960, 0.4994258
  %v962 = vmul.f32 %v942, %v961
  %v963 = vadd.f32 %v962, 1.0
  %v964 = vrcp.pop %v963
  %v965 = vmul.f32 %v963, %v964
  %v966 = vsub.f32 1.0, %v965
  %v967 = vmul.f32 %v964, %v966
  %v968 = vadd.f32 %v964, %v967
  %vm969 = vweird.f32 %v963
  %vm970 = vweird.f32 %v964
  %vm971 = vmor %vm969, %vm970
  %v972 = vsel %vm971, %v964, %v968
  %v973 = vand.u32 2147483647, %v963
  %vm974 = vcmp.eq.f32.partialorder %v973, 8.507059e+37
  %v975 = vand.u32 %v963, 2147483648
  %v976 = vor.u32 1.1754944e-38, %v975
  %v977 = vsel %vm974, %v976, %v972
  %v978 = vmul.f32 %v953, %v977
  %v979 = vmin.f32 %v978, 1.0
  %v980 = vmax.f32 %v979, -1.0
  %v981 = vadd.f32 %v380, 1.0
  %v982 = vadd.f32 %v420, 1.0
  %v983 = vadd.f32 %v460, 1.0
  %v984 = vadd.f32 %v500, 1.0
  %v985 = vadd.f32 %v540, 1.0
  %v986 = vadd.f32 %v580, 1.0
  %v987 = vadd.f32 %v620, 1.0
  %v988 = vadd.f32 %v660, 1.0
  %v989 = vadd.f32 %v700, 1.0
  %v990 = vadd.f32 %v740, 1.0
  %v991 = vadd.f32 %v780, 1.0
  %v992 = vadd.f32 %v820, 1.0
  %v993 = vadd.f32 %v860, 1.0
  %v994 = vadd.f32 %v900, 1.0
  %v995 = vadd.f32 %v940, 1.0
  %v996 = vadd.f32 %v980, 1.0
  %v997 = vmul.f32 %v309, %v981
  %v998 = vmul.f32 %v310, %v982
  %v999 = vmul.f32 %v311, %v983
  %v1000 = vmul.f32 %v312, %v984
  %v1001 = vmul.f32 %v313, %v985
  %v1002 = vmul.f32 %v314, %v986
  %v1003 = vmul.f32 %v315, %v987
  %v1004 = vmul.f32 %v316, %v988
  %v1005 = vmul.f32 %v317, %v989
  %v1006 = vmul.f32 %v318, %v990
  %v1007 = vmul.f32 %v319, %v991
  %v1008 = vmul.f32 %v320, %v992
  %v1009 = vmul.f32 %v321, %v993
  %v1010 = vmul.f32 %v322, %v994
  %v1011 = vmul.f32 %v323, %v995
  %v1012 = vmul.f32 %v324, %v996
  %1029 = vrot.lane.b32.xlu0 %v997, 96
  %v1030 = vpop.permute.xlu0 %1029
  %1031 = vrot.lane.b32.xlu0 %v998, 96
  %v1032 = vpop.permute.xlu0 %1031
  %1033 = vrot.lane.b32.xlu0 %v999, 96
  %v1034 = vpop.permute.xlu0 %1033
  %1035 = vrot.lane.b32.xlu0 %v1000, 96
  %v1036 = vpop.permute.xlu0 %1035
  %1037 = vrot.lane.b32.xlu0 %v1001, 96
  %v1038 = vpop.permute.xlu0 %1037
  %1039 = vrot.lane.b32.xlu0 %v1002, 96
  %v1040 = vpop.permute.xlu0 %1039
  %1041 = vrot.lane.b32.xlu0 %v1003, 96
  %v1042 = vpop.permute.xlu0 %1041
  %1043 = vrot.lane.b32.xlu0 %v1004, 96
  %v1044 = vpop.permute.xlu0 %1043
  %1045 = vrot.lane.b32.xlu0 %v1005, 96
  %v1046 = vpop.permute.xlu0 %1045
  %1047 = vrot.lane.b32.xlu0 %v1006, 96
  %v1048 = vpop.permute.xlu0 %1047
  %1049 = vrot.lane.b32.xlu0 %v1007, 96
  %v1050 = vpop.permute.xlu0 %1049
  %1051 = vrot.lane.b32.xlu0 %v1008, 96
  %v1052 = vpop.permute.xlu0 %1051
  %1053 = vrot.lane.b32.xlu0 %v1009, 96
  %v1054 = vpop.permute.xlu0 %1053
  %1055 = vrot.lane.b32.xlu0 %v1010, 96
  %v1056 = vpop.permute.xlu0 %1055
  %1057 = vrot.lane.b32.xlu0 %v1011, 96
  %v1058 = vpop.permute.xlu0 %1057
  %1059 = vrot.lane.b32.xlu0 %v1012, 96
  %v1060 = vpop.permute.xlu0 %1059
  %v1077 = vmul.f32 %v997, %v1030
  %v1078 = vmul.f32 %v998, %v1032
  %v1079 = vmul.f32 %v999, %v1034
  %v1080 = vmul.f32 %v1000, %v1036
  %v1081 = vmul.f32 %v1001, %v1038
  %v1082 = vmul.f32 %v1002, %v1040
  %v1083 = vmul.f32 %v1003, %v1042
  %v1084 = vmul.f32 %v1004, %v1044
  %v1085 = vmul.f32 %v1005, %v1046
  %v1086 = vmul.f32 %v1006, %v1048
  %v1087 = vmul.f32 %v1007, %v1050
  %v1088 = vmul.f32 %v1008, %v1052
  %v1089 = vmul.f32 %v1009, %v1054
  %v1090 = vmul.f32 %v1010, %v1056
  %v1091 = vmul.f32 %v1011, %v1058
  %v1092 = vmul.f32 %v1012, %v1060
  %v1093 = vpack.c.bf16 %v997, %v997
  %v1094 = vpack.c.bf16 %v998, %v998
  %v1095 = vpack.c.bf16 %v999, %v999
  %v1096 = vpack.c.bf16 %v1000, %v1000
  %v1097 = vpack.c.bf16 %v1001, %v1001
  %v1098 = vpack.c.bf16 %v1002, %v1002
  %v1099 = vpack.c.bf16 %v1003, %v1003
  %v1100 = vpack.c.bf16 %v1004, %v1004
  %v1101 = vpack.c.bf16 %v1005, %v1005
  %v1102 = vpack.c.bf16 %v1006, %v1006
  %v1103 = vpack.c.bf16 %v1007, %v1007
  %v1104 = vpack.c.bf16 %v1008, %v1008
  %v1105 = vpack.c.bf16 %v1009, %v1009
  %v1106 = vpack.c.bf16 %v1010, %v1010
  %v1107 = vpack.c.bf16 %v1011, %v1011
  %v1108 = vpack.c.bf16 %v1012, %v1012
  %v1109 = vpack.c.bf16 %v1077, %v1077
  %v1110 = vpack.c.bf16 %v1078, %v1078
  %v1111 = vpack.c.bf16 %v1079, %v1079
  %v1112 = vpack.c.bf16 %v1080, %v1080
  %v1113 = vpack.c.bf16 %v1081, %v1081
  %v1114 = vpack.c.bf16 %v1082, %v1082
  %v1115 = vpack.c.bf16 %v1083, %v1083
  %v1116 = vpack.c.bf16 %v1084, %v1084
  %v1117 = vpack.c.bf16 %v1085, %v1085
  %v1118 = vpack.c.bf16 %v1086, %v1086
  %v1119 = vpack.c.bf16 %v1087, %v1087
  %v1120 = vpack.c.bf16 %v1088, %v1088
  %v1121 = vpack.c.bf16 %v1089, %v1089
  %v1122 = vpack.c.bf16 %v1090, %v1090
  %v1123 = vpack.c.bf16 %v1091, %v1091
  %v1124 = vpack.c.bf16 %v1092, %v1092
  %v1141 = vunpack.c.l.b16 %v1093
  %v1142 = vunpack.c.l.b16 %v1094
  %v1143 = vunpack.c.l.b16 %v1095
  %v1144 = vunpack.c.l.b16 %v1096
  %v1145 = vunpack.c.l.b16 %v1097
  %v1146 = vunpack.c.l.b16 %v1098
  %v1147 = vunpack.c.l.b16 %v1099
  %v1148 = vunpack.c.l.b16 %v1100
  %v1149 = vunpack.c.l.b16 %v1101
  %v1150 = vunpack.c.l.b16 %v1102
  %v1151 = vunpack.c.l.b16 %v1103
  %v1152 = vunpack.c.l.b16 %v1104
  %v1153 = vunpack.c.l.b16 %v1105
  %v1154 = vunpack.c.l.b16 %v1106
  %v1155 = vunpack.c.l.b16 %v1107
  %v1156 = vunpack.c.l.b16 %v1108
  %v1157 = vpack.c.b16 %v1142, %v1141
  %v1158 = vpack.c.b16 %v1144, %v1143
  %v1159 = vpack.c.b16 %v1146, %v1145
  %v1160 = vpack.c.b16 %v1148, %v1147
  %v1161 = vpack.c.b16 %v1150, %v1149
  %v1162 = vpack.c.b16 %v1152, %v1151
  %v1163 = vpack.c.b16 %v1154, %v1153
  %v1164 = vpack.c.b16 %v1156, %v1155
  %v1181 = vunpack.c.l.b16 %v1109
  %v1182 = vunpack.c.l.b16 %v1110
  %v1183 = vunpack.c.l.b16 %v1111
  %v1184 = vunpack.c.l.b16 %v1112
  %v1185 = vunpack.c.l.b16 %v1113
  %v1186 = vunpack.c.l.b16 %v1114
  %v1187 = vunpack.c.l.b16 %v1115
  %v1188 = vunpack.c.l.b16 %v1116
  %v1189 = vunpack.c.l.b16 %v1117
  %v1190 = vunpack.c.l.b16 %v1118
  %v1191 = vunpack.c.l.b16 %v1119
  %v1192 = vunpack.c.l.b16 %v1120
  %v1193 = vunpack.c.l.b16 %v1121
  %v1194 = vunpack.c.l.b16 %v1122
  %v1195 = vunpack.c.l.b16 %v1123
  %v1196 = vunpack.c.l.b16 %v1124
  %v1197 = vpack.c.b16 %v1182, %v1181
  %v1198 = vpack.c.b16 %v1184, %v1183
  %v1199 = vpack.c.b16 %v1186, %v1185
  %v1200 = vpack.c.b16 %v1188, %v1187
  %v1201 = vpack.c.b16 %v1190, %v1189
  %v1202 = vpack.c.b16 %v1192, %v1191
  %v1203 = vpack.c.b16 %v1194, %v1193
  %v1204 = vpack.c.b16 %v1196, %v1195
  %1205 = vrot.lane.b32.xlu0 %v1197, 64
  %v1206 = vpop.permute.xlu0 %1205
  %1207 = vrot.lane.b32.xlu0 %v1198, 64
  %v1208 = vpop.permute.xlu0 %1207
  %1209 = vrot.lane.b32.xlu0 %v1199, 64
  %v1210 = vpop.permute.xlu0 %1209
  %1211 = vrot.lane.b32.xlu0 %v1200, 64
  %v1212 = vpop.permute.xlu0 %1211
  %1213 = vrot.lane.b32.xlu0 %v1201, 64
  %v1214 = vpop.permute.xlu0 %1213
  %1215 = vrot.lane.b32.xlu0 %v1202, 64
  %v1216 = vpop.permute.xlu0 %1215
  %1217 = vrot.lane.b32.xlu0 %v1203, 64
  %v1218 = vpop.permute.xlu0 %1217
  %1219 = vrot.lane.b32.xlu0 %v1204, 64
  %v1220 = vpop.permute.xlu0 %1219
  %vm1221 = vcmask 523264
  %v1224 = vsel %vm1221, %v1157, %v1206
  %v1227 = vsel %vm1221, %v1158, %v1208
  %v1230 = vsel %vm1221, %v1159, %v1210
  %v1233 = vsel %vm1221, %v1160, %v1212
  %v1236 = vsel %vm1221, %v1161, %v1214
  %v1239 = vsel %vm1221, %v1162, %v1216
  %v1242 = vsel %vm1221, %v1163, %v1218
  %v1245 = vsel %vm1221, %v1164, %v1220
  %v1246 = vld [vmem:[%s4] sm:$0xf]
  %v1247 = vld [vmem:[%s4 + $0x4] sm:$0xf]
  %v1248 = vld [vmem:[%s4 + $0x8] sm:$0xf]
  %v1249 = vld [vmem:[%s4 + $0xc] sm:$0xf]
  %v1250 = vld [vmem:[%s4 + $0x10] sm:$0xf]
  %v1251 = vld [vmem:[%s4 + $0x14] sm:$0xf]
  %v1252 = vld [vmem:[%s4 + $0x18] sm:$0xf]
  %v1253 = vld [vmem:[%s4 + $0x1c] sm:$0xf]
  %v1254 = vld [vmem:[%s4 + $0x20] sm:$0xf]
  %v1255 = vld [vmem:[%s4 + $0x24] sm:$0xf]
  %v1256 = vld [vmem:[%s4 + $0x28] sm:$0xf]
  %v1257 = vld [vmem:[%s4 + $0x2c] sm:$0xf]
  %v1258 = vld [vmem:[%s5] sm:$0x1]
  %v1260 = vperm.slane %v1258, 0
  %v1274 = vunpack.c.l.b16 %v1246
  %v1275 = vunpack.c.l.b16 %v1247
  %v1276 = vunpack.c.l.b16 %v1248
  %v1277 = vunpack.c.l.b16 %v1249
  %v1278 = vunpack.c.l.b16 %v1250
  %v1279 = vunpack.c.l.b16 %v1251
  %v1280 = vunpack.c.l.b16 %v1252
  %v1281 = vunpack.c.l.b16 %v1253
  %v1282 = vunpack.c.l.b16 %v1254
  %v1283 = vunpack.c.l.b16 %v1255
  %v1284 = vunpack.c.l.b16 %v1256
  %v1285 = vunpack.c.l.b16 %v1257
  %v1286 = vpack.c.b16 %v1275, %v1274
  %v1287 = vpack.c.b16 %v1277, %v1276
  %v1288 = vpack.c.b16 %v1279, %v1278
  %v1289 = vpack.c.b16 %v1281, %v1280
  %v1290 = vpack.c.b16 %v1283, %v1282
  %v1291 = vpack.c.b16 %v1285, %v1284
  %vm1298 = vcmask 785408
  %v1299 = vsel %vm1298, %v1224, 0
  %v1301 = vsel %vm1298, %v1227, 0
  %v1303 = vsel %vm1298, %v1230, 0
  %v1305 = vsel %vm1298, %v1233, 0
  %v1307 = vsel %vm1298, %v1236, 0
  %v1309 = vsel %vm1298, %v1239, 0
  %v1311 = vsel %vm1298, %v1242, 0
  %v1313 = vsel %vm1298, %v1245, 0
  %1315 = vmatpush.bf16.msra.mxu0 0
  %1316 = vmatpush.bf16.msra.mxu0 0
  %1317 = vmatpush.bf16.msra.mxu0 %v1291
  %1318 = vmatpush.bf16.msra.mxu0 %v1290
  %1319 = vmatpush.bf16.msra.mxu0 %v1289
  %1320 = vmatpush.bf16.msra.mxu0 %v1288
  %1321 = vmatpush.bf16.msra.mxu0 %v1287
  %1322 = vmatpush.bf16.msra.mxu0 %v1286
  %1323 = vmatmul.bf16.gmra.mxu0 %v1299
  %v1324 = vpop.f32.mrf.mxu0
  %v1325 = vadd.f32 %v1260, %v1324
  %v1326 = vpop.f32.mrf.mxu0
  %v1327 = vadd.f32 %v1260, %v1326
  %1328 = vmatmul.bf16.gmra.mxu0 %v1301
  %v1329 = vpop.f32.mrf.mxu0
  %v1330 = vadd.f32 %v1260, %v1329
  %v1331 = vpop.f32.mrf.mxu0
  %v1332 = vadd.f32 %v1260, %v1331
  %1333 = vmatmul.bf16.gmra.mxu0 %v1303
  %v1334 = vpop.f32.mrf.mxu0
  %v1335 = vadd.f32 %v1260, %v1334
  %v1336 = vpop.f32.mrf.mxu0
  %v1337 = vadd.f32 %v1260, %v1336
  %1338 = vmatmul.bf16.gmra.mxu0 %v1305
  %v1339 = vpop.f32.mrf.mxu0
  %v1340 = vadd.f32 %v1260, %v1339
  %v1341 = vpop.f32.mrf.mxu0
  %v1342 = vadd.f32 %v1260, %v1341
  %1343 = vmatmul.bf16.gmra.mxu0 %v1307
  %v1344 = vpop.f32.mrf.mxu0
  %v1345 = vadd.f32 %v1260, %v1344
  %v1346 = vpop.f32.mrf.mxu0
  %v1347 = vadd.f32 %v1260, %v1346
  %1348 = vmatmul.bf16.gmra.mxu0 %v1309
  %v1349 = vpop.f32.mrf.mxu0
  %v1350 = vadd.f32 %v1260, %v1349
  %v1351 = vpop.f32.mrf.mxu0
  %v1352 = vadd.f32 %v1260, %v1351
  %1353 = vmatmul.bf16.gmra.mxu0 %v1311
  %v1354 = vpop.f32.mrf.mxu0
  %v1355 = vadd.f32 %v1260, %v1354
  %v1356 = vpop.f32.mrf.mxu0
  %v1357 = vadd.f32 %v1260, %v1356
  %1358 = vmatmul.bf16.gmra.mxu0 %v1313
  %v1359 = vpop.f32.mrf.mxu0
  %v1360 = vadd.f32 %v1260, %v1359
  %v1361 = vpop.f32.mrf.mxu0
  %v1362 = vadd.f32 %v1260, %v1361
  %1363 = vdwg.mxu0
  %v1364 = vmul.f32 %v1325, 0.5
  %v1365 = vmul.f32 %v1327, 0.5
  %v1366 = vmul.f32 %v1330, 0.5
  %v1367 = vmul.f32 %v1332, 0.5
  %v1368 = vmul.f32 %v1335, 0.5
  %v1369 = vmul.f32 %v1337, 0.5
  %v1370 = vmul.f32 %v1340, 0.5
  %v1371 = vmul.f32 %v1342, 0.5
  %v1372 = vmul.f32 %v1345, 0.5
  %v1373 = vmul.f32 %v1347, 0.5
  %v1374 = vmul.f32 %v1350, 0.5
  %v1375 = vmul.f32 %v1352, 0.5
  %v1376 = vmul.f32 %v1355, 0.5
  %v1377 = vmul.f32 %v1357, 0.5
  %v1378 = vmul.f32 %v1360, 0.5
  %v1379 = vmul.f32 %v1362, 0.5
  %v1380 = vmul.f32 %v1325, 0.70710677
  %v1381 = vmul.f32 %v1327, 0.70710677
  %v1382 = vmul.f32 %v1330, 0.70710677
  %v1383 = vmul.f32 %v1332, 0.70710677
  %v1384 = vmul.f32 %v1335, 0.70710677
  %v1385 = vmul.f32 %v1337, 0.70710677
  %v1386 = vmul.f32 %v1340, 0.70710677
  %v1387 = vmul.f32 %v1342, 0.70710677
  %v1388 = vmul.f32 %v1345, 0.70710677
  %v1389 = vmul.f32 %v1347, 0.70710677
  %v1390 = vmul.f32 %v1350, 0.70710677
  %v1391 = vmul.f32 %v1352, 0.70710677
  %v1392 = vmul.f32 %v1355, 0.70710677
  %v1393 = vmul.f32 %v1357, 0.70710677
  %v1394 = vmul.f32 %v1360, 0.70710677
  %v1395 = vmul.f32 %v1362, 0.70710677
  %v1396 = vmul.f32 %v1380, %v1380
  %v1397 = vmin.f32 16.0, %v1396
  %v1398 = vmul.f32 %v1397, 2.1237322e-06
  %v1399 = vadd.f32 %v1398, 0.00028619796
  %v1400 = vmul.f32 %v1397, %v1399
  %v1401 = vadd.f32 %v1400, 0.0036580483
  %v1402 = vmul.f32 %v1397, %v1401
  %v1403 = vadd.f32 %v1402, 0.05243302
  %v1404 = vmul.f32 %v1397, %v1403
  %v1405 = vadd.f32 %v1404, 0.18741608
  %v1406 = vmul.f32 %v1397, %v1405
  %v1407 = vadd.f32 %v1406, 1.1283791
  %v1408 = vmul.f32 %v1380, %v1407
  %v1409 = vmul.f32 %v1397, 3.8918573e-05
  %v1410 = vadd.f32 %v1409, 0.001143296
  %v1411 = vmul.f32 %v1397, %v1410
  %v1412 = vadd.f32 %v1411, 0.014752088
  %v1413 = vmul.f32 %v1397, %v1412
  %v1414 = vadd.f32 %v1413, 0.112945676
  %v1415 = vmul.f32 %v1397, %v1414
  %v1416 = vadd.f32 %v1415, 0.4994258
  %v1417 = vmul.f32 %v1397, %v1416
  %v1418 = vadd.f32 %v1417, 1.0
  %v1419 = vrcp.pop %v1418
  %v1420 = vmul.f32 %v1418, %v1419
  %v1421 = vsub.f32 1.0, %v1420
  %v1422 = vmul.f32 %v1419, %v1421
  %v1423 = vadd.f32 %v1419, %v1422
  %vm1424 = vweird.f32 %v1418
  %vm1425 = vweird.f32 %v1419
  %vm1426 = vmor %vm1424, %vm1425
  %v1427 = vsel %vm1426, %v1419, %v1423
  %v1428 = vand.u32 2147483647, %v1418
  %vm1429 = vcmp.eq.f32.partialorder %v1428, 8.507059e+37
  %v1430 = vand.u32 %v1418, 2147483648
  %v1431 = vor.u32 1.1754944e-38, %v1430
  %v1432 = vsel %vm1429, %v1431, %v1427
  %v1433 = vmul.f32 %v1408, %v1432
  %v1434 = vmin.f32 %v1433, 1.0
  %v1435 = vmax.f32 %v1434, -1.0
  %v1436 = vmul.f32 %v1381, %v1381
  %v1437 = vmin.f32 16.0, %v1436
  %v1438 = vmul.f32 %v1437, 2.1237322e-06
  %v1439 = vadd.f32 %v1438, 0.00028619796
  %v1440 = vmul.f32 %v1437, %v1439
  %v1441 = vadd.f32 %v1440, 0.0036580483
  %v1442 = vmul.f32 %v1437, %v1441
  %v1443 = vadd.f32 %v1442, 0.05243302
  %v1444 = vmul.f32 %v1437, %v1443
  %v1445 = vadd.f32 %v1444, 0.18741608
  %v1446 = vmul.f32 %v1437, %v1445
  %v1447 = vadd.f32 %v1446, 1.1283791
  %v1448 = vmul.f32 %v1381, %v1447
  %v1449 = vmul.f32 %v1437, 3.8918573e-05
  %v1450 = vadd.f32 %v1449, 0.001143296
  %v1451 = vmul.f32 %v1437, %v1450
  %v1452 = vadd.f32 %v1451, 0.014752088
  %v1453 = vmul.f32 %v1437, %v1452
  %v1454 = vadd.f32 %v1453, 0.112945676
  %v1455 = vmul.f32 %v1437, %v1454
  %v1456 = vadd.f32 %v1455, 0.4994258
  %v1457 = vmul.f32 %v1437, %v1456
  %v1458 = vadd.f32 %v1457, 1.0
  %v1459 = vrcp.pop %v1458
  %v1460 = vmul.f32 %v1458, %v1459
  %v1461 = vsub.f32 1.0, %v1460
  %v1462 = vmul.f32 %v1459, %v1461
  %v1463 = vadd.f32 %v1459, %v1462
  %vm1464 = vweird.f32 %v1458
  %vm1465 = vweird.f32 %v1459
  %vm1466 = vmor %vm1464, %vm1465
  %v1467 = vsel %vm1466, %v1459, %v1463
  %v1468 = vand.u32 2147483647, %v1458
  %vm1469 = vcmp.eq.f32.partialorder %v1468, 8.507059e+37
  %v1470 = vand.u32 %v1458, 2147483648
  %v1471 = vor.u32 1.1754944e-38, %v1470
  %v1472 = vsel %vm1469, %v1471, %v1467
  %v1473 = vmul.f32 %v1448, %v1472
  %v1474 = vmin.f32 %v1473, 1.0
  %v1475 = vmax.f32 %v1474, -1.0
  %v1476 = vmul.f32 %v1382, %v1382
  %v1477 = vmin.f32 16.0, %v1476
  %v1478 = vmul.f32 %v1477, 2.1237322e-06
  %v1479 = vadd.f32 %v1478, 0.00028619796
  %v1480 = vmul.f32 %v1477, %v1479
  %v1481 = vadd.f32 %v1480, 0.0036580483
  %v1482 = vmul.f32 %v1477, %v1481
  %v1483 = vadd.f32 %v1482, 0.05243302
  %v1484 = vmul.f32 %v1477, %v1483
  %v1485 = vadd.f32 %v1484, 0.18741608
  %v1486 = vmul.f32 %v1477, %v1485
  %v1487 = vadd.f32 %v1486, 1.1283791
  %v1488 = vmul.f32 %v1382, %v1487
  %v1489 = vmul.f32 %v1477, 3.8918573e-05
  %v1490 = vadd.f32 %v1489, 0.001143296
  %v1491 = vmul.f32 %v1477, %v1490
  %v1492 = vadd.f32 %v1491, 0.014752088
  %v1493 = vmul.f32 %v1477, %v1492
  %v1494 = vadd.f32 %v1493, 0.112945676
  %v1495 = vmul.f32 %v1477, %v1494
  %v1496 = vadd.f32 %v1495, 0.4994258
  %v1497 = vmul.f32 %v1477, %v1496
  %v1498 = vadd.f32 %v1497, 1.0
  %v1499 = vrcp.pop %v1498
  %v1500 = vmul.f32 %v1498, %v1499
  %v1501 = vsub.f32 1.0, %v1500
  %v1502 = vmul.f32 %v1499, %v1501
  %v1503 = vadd.f32 %v1499, %v1502
  %vm1504 = vweird.f32 %v1498
  %vm1505 = vweird.f32 %v1499
  %vm1506 = vmor %vm1504, %vm1505
  %v1507 = vsel %vm1506, %v1499, %v1503
  %v1508 = vand.u32 2147483647, %v1498
  %vm1509 = vcmp.eq.f32.partialorder %v1508, 8.507059e+37
  %v1510 = vand.u32 %v1498, 2147483648
  %v1511 = vor.u32 1.1754944e-38, %v1510
  %v1512 = vsel %vm1509, %v1511, %v1507
  %v1513 = vmul.f32 %v1488, %v1512
  %v1514 = vmin.f32 %v1513, 1.0
  %v1515 = vmax.f32 %v1514, -1.0
  %v1516 = vmul.f32 %v1383, %v1383
  %v1517 = vmin.f32 16.0, %v1516
  %v1518 = vmul.f32 %v1517, 2.1237322e-06
  %v1519 = vadd.f32 %v1518, 0.00028619796
  %v1520 = vmul.f32 %v1517, %v1519
  %v1521 = vadd.f32 %v1520, 0.0036580483
  %v1522 = vmul.f32 %v1517, %v1521
  %v1523 = vadd.f32 %v1522, 0.05243302
  %v1524 = vmul.f32 %v1517, %v1523
  %v1525 = vadd.f32 %v1524, 0.18741608
  %v1526 = vmul.f32 %v1517, %v1525
  %v1527 = vadd.f32 %v1526, 1.1283791
  %v1528 = vmul.f32 %v1383, %v1527
  %v1529 = vmul.f32 %v1517, 3.8918573e-05
  %v1530 = vadd.f32 %v1529, 0.001143296
  %v1531 = vmul.f32 %v1517, %v1530
  %v1532 = vadd.f32 %v1531, 0.014752088
  %v1533 = vmul.f32 %v1517, %v1532
  %v1534 = vadd.f32 %v1533, 0.112945676
  %v1535 = vmul.f32 %v1517, %v1534
  %v1536 = vadd.f32 %v1535, 0.4994258
  %v1537 = vmul.f32 %v1517, %v1536
  %v1538 = vadd.f32 %v1537, 1.0
  %v1539 = vrcp.pop %v1538
  %v1540 = vmul.f32 %v1538, %v1539
  %v1541 = vsub.f32 1.0, %v1540
  %v1542 = vmul.f32 %v1539, %v1541
  %v1543 = vadd.f32 %v1539, %v1542
  %vm1544 = vweird.f32 %v1538
  %vm1545 = vweird.f32 %v1539
  %vm1546 = vmor %vm1544, %vm1545
  %v1547 = vsel %vm1546, %v1539, %v1543
  %v1548 = vand.u32 2147483647, %v1538
  %vm1549 = vcmp.eq.f32.partialorder %v1548, 8.507059e+37
  %v1550 = vand.u32 %v1538, 2147483648
  %v1551 = vor.u32 1.1754944e-38, %v1550
  %v1552 = vsel %vm1549, %v1551, %v1547
  %v1553 = vmul.f32 %v1528, %v1552
  %v1554 = vmin.f32 %v1553, 1.0
  %v1555 = vmax.f32 %v1554, -1.0
  %v1556 = vmul.f32 %v1384, %v1384
  %v1557 = vmin.f32 16.0, %v1556
  %v1558 = vmul.f32 %v1557, 2.1237322e-06
  %v1559 = vadd.f32 %v1558, 0.00028619796
  %v1560 = vmul.f32 %v1557, %v1559
  %v1561 = vadd.f32 %v1560, 0.0036580483
  %v1562 = vmul.f32 %v1557, %v1561
  %v1563 = vadd.f32 %v1562, 0.05243302
  %v1564 = vmul.f32 %v1557, %v1563
  %v1565 = vadd.f32 %v1564, 0.18741608
  %v1566 = vmul.f32 %v1557, %v1565
  %v1567 = vadd.f32 %v1566, 1.1283791
  %v1568 = vmul.f32 %v1384, %v1567
  %v1569 = vmul.f32 %v1557, 3.8918573e-05
  %v1570 = vadd.f32 %v1569, 0.001143296
  %v1571 = vmul.f32 %v1557, %v1570
  %v1572 = vadd.f32 %v1571, 0.014752088
  %v1573 = vmul.f32 %v1557, %v1572
  %v1574 = vadd.f32 %v1573, 0.112945676
  %v1575 = vmul.f32 %v1557, %v1574
  %v1576 = vadd.f32 %v1575, 0.4994258
  %v1577 = vmul.f32 %v1557, %v1576
  %v1578 = vadd.f32 %v1577, 1.0
  %v1579 = vrcp.pop %v1578
  %v1580 = vmul.f32 %v1578, %v1579
  %v1581 = vsub.f32 1.0, %v1580
  %v1582 = vmul.f32 %v1579, %v1581
  %v1583 = vadd.f32 %v1579, %v1582
  %vm1584 = vweird.f32 %v1578
  %vm1585 = vweird.f32 %v1579
  %vm1586 = vmor %vm1584, %vm1585
  %v1587 = vsel %vm1586, %v1579, %v1583
  %v1588 = vand.u32 2147483647, %v1578
  %vm1589 = vcmp.eq.f32.partialorder %v1588, 8.507059e+37
  %v1590 = vand.u32 %v1578, 2147483648
  %v1591 = vor.u32 1.1754944e-38, %v1590
  %v1592 = vsel %vm1589, %v1591, %v1587
  %v1593 = vmul.f32 %v1568, %v1592
  %v1594 = vmin.f32 %v1593, 1.0
  %v1595 = vmax.f32 %v1594, -1.0
  %v1596 = vmul.f32 %v1385, %v1385
  %v1597 = vmin.f32 16.0, %v1596
  %v1598 = vmul.f32 %v1597, 2.1237322e-06
  %v1599 = vadd.f32 %v1598, 0.00028619796
  %v1600 = vmul.f32 %v1597, %v1599
  %v1601 = vadd.f32 %v1600, 0.0036580483
  %v1602 = vmul.f32 %v1597, %v1601
  %v1603 = vadd.f32 %v1602, 0.05243302
  %v1604 = vmul.f32 %v1597, %v1603
  %v1605 = vadd.f32 %v1604, 0.18741608
  %v1606 = vmul.f32 %v1597, %v1605
  %v1607 = vadd.f32 %v1606, 1.1283791
  %v1608 = vmul.f32 %v1385, %v1607
  %v1609 = vmul.f32 %v1597, 3.8918573e-05
  %v1610 = vadd.f32 %v1609, 0.001143296
  %v1611 = vmul.f32 %v1597, %v1610
  %v1612 = vadd.f32 %v1611, 0.014752088
  %v1613 = vmul.f32 %v1597, %v1612
  %v1614 = vadd.f32 %v1613, 0.112945676
  %v1615 = vmul.f32 %v1597, %v1614
  %v1616 = vadd.f32 %v1615, 0.4994258
  %v1617 = vmul.f32 %v1597, %v1616
  %v1618 = vadd.f32 %v1617, 1.0
  %v1619 = vrcp.pop %v1618
  %v1620 = vmul.f32 %v1618, %v1619
  %v1621 = vsub.f32 1.0, %v1620
  %v1622 = vmul.f32 %v1619, %v1621
  %v1623 = vadd.f32 %v1619, %v1622
  %vm1624 = vweird.f32 %v1618
  %vm1625 = vweird.f32 %v1619
  %vm1626 = vmor %vm1624, %vm1625
  %v1627 = vsel %vm1626, %v1619, %v1623
  %v1628 = vand.u32 2147483647, %v1618
  %vm1629 = vcmp.eq.f32.partialorder %v1628, 8.507059e+37
  %v1630 = vand.u32 %v1618, 2147483648
  %v1631 = vor.u32 1.1754944e-38, %v1630
  %v1632 = vsel %vm1629, %v1631, %v1627
  %v1633 = vmul.f32 %v1608, %v1632
  %v1634 = vmin.f32 %v1633, 1.0
  %v1635 = vmax.f32 %v1634, -1.0
  %v1636 = vmul.f32 %v1386, %v1386
  %v1637 = vmin.f32 16.0, %v1636
  %v1638 = vmul.f32 %v1637, 2.1237322e-06
  %v1639 = vadd.f32 %v1638, 0.00028619796
  %v1640 = vmul.f32 %v1637, %v1639
  %v1641 = vadd.f32 %v1640, 0.0036580483
  %v1642 = vmul.f32 %v1637, %v1641
  %v1643 = vadd.f32 %v1642, 0.05243302
  %v1644 = vmul.f32 %v1637, %v1643
  %v1645 = vadd.f32 %v1644, 0.18741608
  %v1646 = vmul.f32 %v1637, %v1645
  %v1647 = vadd.f32 %v1646, 1.1283791
  %v1648 = vmul.f32 %v1386, %v1647
  %v1649 = vmul.f32 %v1637, 3.8918573e-05
  %v1650 = vadd.f32 %v1649, 0.001143296
  %v1651 = vmul.f32 %v1637, %v1650
  %v1652 = vadd.f32 %v1651, 0.014752088
  %v1653 = vmul.f32 %v1637, %v1652
  %v1654 = vadd.f32 %v1653, 0.112945676
  %v1655 = vmul.f32 %v1637, %v1654
  %v1656 = vadd.f32 %v1655, 0.4994258
  %v1657 = vmul.f32 %v1637, %v1656
  %v1658 = vadd.f32 %v1657, 1.0
  %v1659 = vrcp.pop %v1658
  %v1660 = vmul.f32 %v1658, %v1659
  %v1661 = vsub.f32 1.0, %v1660
  %v1662 = vmul.f32 %v1659, %v1661
  %v1663 = vadd.f32 %v1659, %v1662
  %vm1664 = vweird.f32 %v1658
  %vm1665 = vweird.f32 %v1659
  %vm1666 = vmor %vm1664, %vm1665
  %v1667 = vsel %vm1666, %v1659, %v1663
  %v1668 = vand.u32 2147483647, %v1658
  %vm1669 = vcmp.eq.f32.partialorder %v1668, 8.507059e+37
  %v1670 = vand.u32 %v1658, 2147483648
  %v1671 = vor.u32 1.1754944e-38, %v1670
  %v1672 = vsel %vm1669, %v1671, %v1667
  %v1673 = vmul.f32 %v1648, %v1672
  %v1674 = vmin.f32 %v1673, 1.0
  %v1675 = vmax.f32 %v1674, -1.0
  %v1676 = vmul.f32 %v1387, %v1387
  %v1677 = vmin.f32 16.0, %v1676
  %v1678 = vmul.f32 %v1677, 2.1237322e-06
  %v1679 = vadd.f32 %v1678, 0.00028619796
  %v1680 = vmul.f32 %v1677, %v1679
  %v1681 = vadd.f32 %v1680, 0.0036580483
  %v1682 = vmul.f32 %v1677, %v1681
  %v1683 = vadd.f32 %v1682, 0.05243302
  %v1684 = vmul.f32 %v1677, %v1683
  %v1685 = vadd.f32 %v1684, 0.18741608
  %v1686 = vmul.f32 %v1677, %v1685
  %v1687 = vadd.f32 %v1686, 1.1283791
  %v1688 = vmul.f32 %v1387, %v1687
  %v1689 = vmul.f32 %v1677, 3.8918573e-05
  %v1690 = vadd.f32 %v1689, 0.001143296
  %v1691 = vmul.f32 %v1677, %v1690
  %v1692 = vadd.f32 %v1691, 0.014752088
  %v1693 = vmul.f32 %v1677, %v1692
  %v1694 = vadd.f32 %v1693, 0.112945676
  %v1695 = vmul.f32 %v1677, %v1694
  %v1696 = vadd.f32 %v1695, 0.4994258
  %v1697 = vmul.f32 %v1677, %v1696
  %v1698 = vadd.f32 %v1697, 1.0
  %v1699 = vrcp.pop %v1698
  %v1700 = vmul.f32 %v1698, %v1699
  %v1701 = vsub.f32 1.0, %v1700
  %v1702 = vmul.f32 %v1699, %v1701
  %v1703 = vadd.f32 %v1699, %v1702
  %vm1704 = vweird.f32 %v1698
  %vm1705 = vweird.f32 %v1699
  %vm1706 = vmor %vm1704, %vm1705
  %v1707 = vsel %vm1706, %v1699, %v1703
  %v1708 = vand.u32 2147483647, %v1698
  %vm1709 = vcmp.eq.f32.partialorder %v1708, 8.507059e+37
  %v1710 = vand.u32 %v1698, 2147483648
  %v1711 = vor.u32 1.1754944e-38, %v1710
  %v1712 = vsel %vm1709, %v1711, %v1707
  %v1713 = vmul.f32 %v1688, %v1712
  %v1714 = vmin.f32 %v1713, 1.0
  %v1715 = vmax.f32 %v1714, -1.0
  %v1716 = vmul.f32 %v1388, %v1388
  %v1717 = vmin.f32 16.0, %v1716
  %v1718 = vmul.f32 %v1717, 2.1237322e-06
  %v1719 = vadd.f32 %v1718, 0.00028619796
  %v1720 = vmul.f32 %v1717, %v1719
  %v1721 = vadd.f32 %v1720, 0.0036580483
  %v1722 = vmul.f32 %v1717, %v1721
  %v1723 = vadd.f32 %v1722, 0.05243302
  %v1724 = vmul.f32 %v1717, %v1723
  %v1725 = vadd.f32 %v1724, 0.18741608
  %v1726 = vmul.f32 %v1717, %v1725
  %v1727 = vadd.f32 %v1726, 1.1283791
  %v1728 = vmul.f32 %v1388, %v1727
  %v1729 = vmul.f32 %v1717, 3.8918573e-05
  %v1730 = vadd.f32 %v1729, 0.001143296
  %v1731 = vmul.f32 %v1717, %v1730
  %v1732 = vadd.f32 %v1731, 0.014752088
  %v1733 = vmul.f32 %v1717, %v1732
  %v1734 = vadd.f32 %v1733, 0.112945676
  %v1735 = vmul.f32 %v1717, %v1734
  %v1736 = vadd.f32 %v1735, 0.4994258
  %v1737 = vmul.f32 %v1717, %v1736
  %v1738 = vadd.f32 %v1737, 1.0
  %v1739 = vrcp.pop %v1738
  %v1740 = vmul.f32 %v1738, %v1739
  %v1741 = vsub.f32 1.0, %v1740
  %v1742 = vmul.f32 %v1739, %v1741
  %v1743 = vadd.f32 %v1739, %v1742
  %vm1744 = vweird.f32 %v1738
  %vm1745 = vweird.f32 %v1739
  %vm1746 = vmor %vm1744, %vm1745
  %v1747 = vsel %vm1746, %v1739, %v1743
  %v1748 = vand.u32 2147483647, %v1738
  %vm1749 = vcmp.eq.f32.partialorder %v1748, 8.507059e+37
  %v1750 = vand.u32 %v1738, 2147483648
  %v1751 = vor.u32 1.1754944e-38, %v1750
  %v1752 = vsel %vm1749, %v1751, %v1747
  %v1753 = vmul.f32 %v1728, %v1752
  %v1754 = vmin.f32 %v1753, 1.0
  %v1755 = vmax.f32 %v1754, -1.0
  %v1756 = vmul.f32 %v1389, %v1389
  %v1757 = vmin.f32 16.0, %v1756
  %v1758 = vmul.f32 %v1757, 2.1237322e-06
  %v1759 = vadd.f32 %v1758, 0.00028619796
  %v1760 = vmul.f32 %v1757, %v1759
  %v1761 = vadd.f32 %v1760, 0.0036580483
  %v1762 = vmul.f32 %v1757, %v1761
  %v1763 = vadd.f32 %v1762, 0.05243302
  %v1764 = vmul.f32 %v1757, %v1763
  %v1765 = vadd.f32 %v1764, 0.18741608
  %v1766 = vmul.f32 %v1757, %v1765
  %v1767 = vadd.f32 %v1766, 1.1283791
  %v1768 = vmul.f32 %v1389, %v1767
  %v1769 = vmul.f32 %v1757, 3.8918573e-05
  %v1770 = vadd.f32 %v1769, 0.001143296
  %v1771 = vmul.f32 %v1757, %v1770
  %v1772 = vadd.f32 %v1771, 0.014752088
  %v1773 = vmul.f32 %v1757, %v1772
  %v1774 = vadd.f32 %v1773, 0.112945676
  %v1775 = vmul.f32 %v1757, %v1774
  %v1776 = vadd.f32 %v1775, 0.4994258
  %v1777 = vmul.f32 %v1757, %v1776
  %v1778 = vadd.f32 %v1777, 1.0
  %v1779 = vrcp.pop %v1778
  %v1780 = vmul.f32 %v1778, %v1779
  %v1781 = vsub.f32 1.0, %v1780
  %v1782 = vmul.f32 %v1779, %v1781
  %v1783 = vadd.f32 %v1779, %v1782
  %vm1784 = vweird.f32 %v1778
  %vm1785 = vweird.f32 %v1779
  %vm1786 = vmor %vm1784, %vm1785
  %v1787 = vsel %vm1786, %v1779, %v1783
  %v1788 = vand.u32 2147483647, %v1778
  %vm1789 = vcmp.eq.f32.partialorder %v1788, 8.507059e+37
  %v1790 = vand.u32 %v1778, 2147483648
  %v1791 = vor.u32 1.1754944e-38, %v1790
  %v1792 = vsel %vm1789, %v1791, %v1787
  %v1793 = vmul.f32 %v1768, %v1792
  %v1794 = vmin.f32 %v1793, 1.0
  %v1795 = vmax.f32 %v1794, -1.0
  %v1796 = vmul.f32 %v1390, %v1390
  %v1797 = vmin.f32 16.0, %v1796
  %v1798 = vmul.f32 %v1797, 2.1237322e-06
  %v1799 = vadd.f32 %v1798, 0.00028619796
  %v1800 = vmul.f32 %v1797, %v1799
  %v1801 = vadd.f32 %v1800, 0.0036580483
  %v1802 = vmul.f32 %v1797, %v1801
  %v1803 = vadd.f32 %v1802, 0.05243302
  %v1804 = vmul.f32 %v1797, %v1803
  %v1805 = vadd.f32 %v1804, 0.18741608
  %v1806 = vmul.f32 %v1797, %v1805
  %v1807 = vadd.f32 %v1806, 1.1283791
  %v1808 = vmul.f32 %v1390, %v1807
  %v1809 = vmul.f32 %v1797, 3.8918573e-05
  %v1810 = vadd.f32 %v1809, 0.001143296
  %v1811 = vmul.f32 %v1797, %v1810
  %v1812 = vadd.f32 %v1811, 0.014752088
  %v1813 = vmul.f32 %v1797, %v1812
  %v1814 = vadd.f32 %v1813, 0.112945676
  %v1815 = vmul.f32 %v1797, %v1814
  %v1816 = vadd.f32 %v1815, 0.4994258
  %v1817 = vmul.f32 %v1797, %v1816
  %v1818 = vadd.f32 %v1817, 1.0
  %v1819 = vrcp.pop %v1818
  %v1820 = vmul.f32 %v1818, %v1819
  %v1821 = vsub.f32 1.0, %v1820
  %v1822 = vmul.f32 %v1819, %v1821
  %v1823 = vadd.f32 %v1819, %v1822
  %vm1824 = vweird.f32 %v1818
  %vm1825 = vweird.f32 %v1819
  %vm1826 = vmor %vm1824, %vm1825
  %v1827 = vsel %vm1826, %v1819, %v1823
  %v1828 = vand.u32 2147483647, %v1818
  %vm1829 = vcmp.eq.f32.partialorder %v1828, 8.507059e+37
  %v1830 = vand.u32 %v1818, 2147483648
  %v1831 = vor.u32 1.1754944e-38, %v1830
  %v1832 = vsel %vm1829, %v1831, %v1827
  %v1833 = vmul.f32 %v1808, %v1832
  %v1834 = vmin.f32 %v1833, 1.0
  %v1835 = vmax.f32 %v1834, -1.0
  %v1836 = vmul.f32 %v1391, %v1391
  %v1837 = vmin.f32 16.0, %v1836
  %v1838 = vmul.f32 %v1837, 2.1237322e-06
  %v1839 = vadd.f32 %v1838, 0.00028619796
  %v1840 = vmul.f32 %v1837, %v1839
  %v1841 = vadd.f32 %v1840, 0.0036580483
  %v1842 = vmul.f32 %v1837, %v1841
  %v1843 = vadd.f32 %v1842, 0.05243302
  %v1844 = vmul.f32 %v1837, %v1843
  %v1845 = vadd.f32 %v1844, 0.18741608
  %v1846 = vmul.f32 %v1837, %v1845
  %v1847 = vadd.f32 %v1846, 1.1283791
  %v1848 = vmul.f32 %v1391, %v1847
  %v1849 = vmul.f32 %v1837, 3.8918573e-05
  %v1850 = vadd.f32 %v1849, 0.001143296
  %v1851 = vmul.f32 %v1837, %v1850
  %v1852 = vadd.f32 %v1851, 0.014752088
  %v1853 = vmul.f32 %v1837, %v1852
  %v1854 = vadd.f32 %v1853, 0.112945676
  %v1855 = vmul.f32 %v1837, %v1854
  %v1856 = vadd.f32 %v1855, 0.4994258
  %v1857 = vmul.f32 %v1837, %v1856
  %v1858 = vadd.f32 %v1857, 1.0
  %v1859 = vrcp.pop %v1858
  %v1860 = vmul.f32 %v1858, %v1859
  %v1861 = vsub.f32 1.0, %v1860
  %v1862 = vmul.f32 %v1859, %v1861
  %v1863 = vadd.f32 %v1859, %v1862
  %vm1864 = vweird.f32 %v1858
  %vm1865 = vweird.f32 %v1859
  %vm1866 = vmor %vm1864, %vm1865
  %v1867 = vsel %vm1866, %v1859, %v1863
  %v1868 = vand.u32 2147483647, %v1858
  %vm1869 = vcmp.eq.f32.partialorder %v1868, 8.507059e+37
  %v1870 = vand.u32 %v1858, 2147483648
  %v1871 = vor.u32 1.1754944e-38, %v1870
  %v1872 = vsel %vm1869, %v1871, %v1867
  %v1873 = vmul.f32 %v1848, %v1872
  %v1874 = vmin.f32 %v1873, 1.0
  %v1875 = vmax.f32 %v1874, -1.0
  %v1876 = vmul.f32 %v1392, %v1392
  %v1877 = vmin.f32 16.0, %v1876
  %v1878 = vmul.f32 %v1877, 2.1237322e-06
  %v1879 = vadd.f32 %v1878, 0.00028619796
  %v1880 = vmul.f32 %v1877, %v1879
  %v1881 = vadd.f32 %v1880, 0.0036580483
  %v1882 = vmul.f32 %v1877, %v1881
  %v1883 = vadd.f32 %v1882, 0.05243302
  %v1884 = vmul.f32 %v1877, %v1883
  %v1885 = vadd.f32 %v1884, 0.18741608
  %v1886 = vmul.f32 %v1877, %v1885
  %v1887 = vadd.f32 %v1886, 1.1283791
  %v1888 = vmul.f32 %v1392, %v1887
  %v1889 = vmul.f32 %v1877, 3.8918573e-05
  %v1890 = vadd.f32 %v1889, 0.001143296
  %v1891 = vmul.f32 %v1877, %v1890
  %v1892 = vadd.f32 %v1891, 0.014752088
  %v1893 = vmul.f32 %v1877, %v1892
  %v1894 = vadd.f32 %v1893, 0.112945676
  %v1895 = vmul.f32 %v1877, %v1894
  %v1896 = vadd.f32 %v1895, 0.4994258
  %v1897 = vmul.f32 %v1877, %v1896
  %v1898 = vadd.f32 %v1897, 1.0
  %v1899 = vrcp.pop %v1898
  %v1900 = vmul.f32 %v1898, %v1899
  %v1901 = vsub.f32 1.0, %v1900
  %v1902 = vmul.f32 %v1899, %v1901
  %v1903 = vadd.f32 %v1899, %v1902
  %vm1904 = vweird.f32 %v1898
  %vm1905 = vweird.f32 %v1899
  %vm1906 = vmor %vm1904, %vm1905
  %v1907 = vsel %vm1906, %v1899, %v1903
  %v1908 = vand.u32 2147483647, %v1898
  %vm1909 = vcmp.eq.f32.partialorder %v1908, 8.507059e+37
  %v1910 = vand.u32 %v1898, 2147483648
  %v1911 = vor.u32 1.1754944e-38, %v1910
  %v1912 = vsel %vm1909, %v1911, %v1907
  %v1913 = vmul.f32 %v1888, %v1912
  %v1914 = vmin.f32 %v1913, 1.0
  %v1915 = vmax.f32 %v1914, -1.0
  %v1916 = vmul.f32 %v1393, %v1393
  %v1917 = vmin.f32 16.0, %v1916
  %v1918 = vmul.f32 %v1917, 2.1237322e-06
  %v1919 = vadd.f32 %v1918, 0.00028619796
  %v1920 = vmul.f32 %v1917, %v1919
  %v1921 = vadd.f32 %v1920, 0.0036580483
  %v1922 = vmul.f32 %v1917, %v1921
  %v1923 = vadd.f32 %v1922, 0.05243302
  %v1924 = vmul.f32 %v1917, %v1923
  %v1925 = vadd.f32 %v1924, 0.18741608
  %v1926 = vmul.f32 %v1917, %v1925
  %v1927 = vadd.f32 %v1926, 1.1283791
  %v1928 = vmul.f32 %v1393, %v1927
  %v1929 = vmul.f32 %v1917, 3.8918573e-05
  %v1930 = vadd.f32 %v1929, 0.001143296
  %v1931 = vmul.f32 %v1917, %v1930
  %v1932 = vadd.f32 %v1931, 0.014752088
  %v1933 = vmul.f32 %v1917, %v1932
  %v1934 = vadd.f32 %v1933, 0.112945676
  %v1935 = vmul.f32 %v1917, %v1934
  %v1936 = vadd.f32 %v1935, 0.4994258
  %v1937 = vmul.f32 %v1917, %v1936
  %v1938 = vadd.f32 %v1937, 1.0
  %v1939 = vrcp.pop %v1938
  %v1940 = vmul.f32 %v1938, %v1939
  %v1941 = vsub.f32 1.0, %v1940
  %v1942 = vmul.f32 %v1939, %v1941
  %v1943 = vadd.f32 %v1939, %v1942
  %vm1944 = vweird.f32 %v1938
  %vm1945 = vweird.f32 %v1939
  %vm1946 = vmor %vm1944, %vm1945
  %v1947 = vsel %vm1946, %v1939, %v1943
  %v1948 = vand.u32 2147483647, %v1938
  %vm1949 = vcmp.eq.f32.partialorder %v1948, 8.507059e+37
  %v1950 = vand.u32 %v1938, 2147483648
  %v1951 = vor.u32 1.1754944e-38, %v1950
  %v1952 = vsel %vm1949, %v1951, %v1947
  %v1953 = vmul.f32 %v1928, %v1952
  %v1954 = vmin.f32 %v1953, 1.0
  %v1955 = vmax.f32 %v1954, -1.0
  %v1956 = vmul.f32 %v1394, %v1394
  %v1957 = vmin.f32 16.0, %v1956
  %v1958 = vmul.f32 %v1957, 2.1237322e-06
  %v1959 = vadd.f32 %v1958, 0.00028619796
  %v1960 = vmul.f32 %v1957, %v1959
  %v1961 = vadd.f32 %v1960, 0.0036580483
  %v1962 = vmul.f32 %v1957, %v1961
  %v1963 = vadd.f32 %v1962, 0.05243302
  %v1964 = vmul.f32 %v1957, %v1963
  %v1965 = vadd.f32 %v1964, 0.18741608
  %v1966 = vmul.f32 %v1957, %v1965
  %v1967 = vadd.f32 %v1966, 1.1283791
  %v1968 = vmul.f32 %v1394, %v1967
  %v1969 = vmul.f32 %v1957, 3.8918573e-05
  %v1970 = vadd.f32 %v1969, 0.001143296
  %v1971 = vmul.f32 %v1957, %v1970
  %v1972 = vadd.f32 %v1971, 0.014752088
  %v1973 = vmul.f32 %v1957, %v1972
  %v1974 = vadd.f32 %v1973, 0.112945676
  %v1975 = vmul.f32 %v1957, %v1974
  %v1976 = vadd.f32 %v1975, 0.4994258
  %v1977 = vmul.f32 %v1957, %v1976
  %v1978 = vadd.f32 %v1977, 1.0
  %v1979 = vrcp.pop %v1978
  %v1980 = vmul.f32 %v1978, %v1979
  %v1981 = vsub.f32 1.0, %v1980
  %v1982 = vmul.f32 %v1979, %v1981
  %v1983 = vadd.f32 %v1979, %v1982
  %vm1984 = vweird.f32 %v1978
  %vm1985 = vweird.f32 %v1979
  %vm1986 = vmor %vm1984, %vm1985
  %v1987 = vsel %vm1986, %v1979, %v1983
  %v1988 = vand.u32 2147483647, %v1978
  %vm1989 = vcmp.eq.f32.partialorder %v1988, 8.507059e+37
  %v1990 = vand.u32 %v1978, 2147483648
  %v1991 = vor.u32 1.1754944e-38, %v1990
  %v1992 = vsel %vm1989, %v1991, %v1987
  %v1993 = vmul.f32 %v1968, %v1992
  %v1994 = vmin.f32 %v1993, 1.0
  %v1995 = vmax.f32 %v1994, -1.0
  %v1996 = vmul.f32 %v1395, %v1395
  %v1997 = vmin.f32 16.0, %v1996
  %v1998 = vmul.f32 %v1997, 2.1237322e-06
  %v1999 = vadd.f32 %v1998, 0.00028619796
  %v2000 = vmul.f32 %v1997, %v1999
  %v2001 = vadd.f32 %v2000, 0.0036580483
  %v2002 = vmul.f32 %v1997, %v2001
  %v2003 = vadd.f32 %v2002, 0.05243302
  %v2004 = vmul.f32 %v1997, %v2003
  %v2005 = vadd.f32 %v2004, 0.18741608
  %v2006 = vmul.f32 %v1997, %v2005
  %v2007 = vadd.f32 %v2006, 1.1283791
  %v2008 = vmul.f32 %v1395, %v2007
  %v2009 = vmul.f32 %v1997, 3.8918573e-05
  %v2010 = vadd.f32 %v2009, 0.001143296
  %v2011 = vmul.f32 %v1997, %v2010
  %v2012 = vadd.f32 %v2011, 0.014752088
  %v2013 = vmul.f32 %v1997, %v2012
  %v2014 = vadd.f32 %v2013, 0.112945676
  %v2015 = vmul.f32 %v1997, %v2014
  %v2016 = vadd.f32 %v2015, 0.4994258
  %v2017 = vmul.f32 %v1997, %v2016
  %v2018 = vadd.f32 %v2017, 1.0
  %v2019 = vrcp.pop %v2018
  %v2020 = vmul.f32 %v2018, %v2019
  %v2021 = vsub.f32 1.0, %v2020
  %v2022 = vmul.f32 %v2019, %v2021
  %v2023 = vadd.f32 %v2019, %v2022
  %vm2024 = vweird.f32 %v2018
  %vm2025 = vweird.f32 %v2019
  %vm2026 = vmor %vm2024, %vm2025
  %v2027 = vsel %vm2026, %v2019, %v2023
  %v2028 = vand.u32 2147483647, %v2018
  %vm2029 = vcmp.eq.f32.partialorder %v2028, 8.507059e+37
  %v2030 = vand.u32 %v2018, 2147483648
  %v2031 = vor.u32 1.1754944e-38, %v2030
  %v2032 = vsel %vm2029, %v2031, %v2027
  %v2033 = vmul.f32 %v2008, %v2032
  %v2034 = vmin.f32 %v2033, 1.0
  %v2035 = vmax.f32 %v2034, -1.0
  %v2036 = vadd.f32 %v1435, 1.0
  %v2037 = vadd.f32 %v1475, 1.0
  %v2038 = vadd.f32 %v1515, 1.0
  %v2039 = vadd.f32 %v1555, 1.0
  %v2040 = vadd.f32 %v1595, 1.0
  %v2041 = vadd.f32 %v1635, 1.0
  %v2042 = vadd.f32 %v1675, 1.0
  %v2043 = vadd.f32 %v1715, 1.0
  %v2044 = vadd.f32 %v1755, 1.0
  %v2045 = vadd.f32 %v1795, 1.0
  %v2046 = vadd.f32 %v1835, 1.0
  %v2047 = vadd.f32 %v1875, 1.0
  %v2048 = vadd.f32 %v1915, 1.0
  %v2049 = vadd.f32 %v1955, 1.0
  %v2050 = vadd.f32 %v1995, 1.0
  %v2051 = vadd.f32 %v2035, 1.0
  %v2052 = vmul.f32 %v1364, %v2036
  %v2053 = vmul.f32 %v1365, %v2037
  %v2054 = vmul.f32 %v1366, %v2038
  %v2055 = vmul.f32 %v1367, %v2039
  %v2056 = vmul.f32 %v1368, %v2040
  %v2057 = vmul.f32 %v1369, %v2041
  %v2058 = vmul.f32 %v1370, %v2042
  %v2059 = vmul.f32 %v1371, %v2043
  %v2060 = vmul.f32 %v1372, %v2044
  %v2061 = vmul.f32 %v1373, %v2045
  %v2062 = vmul.f32 %v1374, %v2046
  %v2063 = vmul.f32 %v1375, %v2047
  %v2064 = vmul.f32 %v1376, %v2048
  %v2065 = vmul.f32 %v1377, %v2049
  %v2066 = vmul.f32 %v1378, %v2050
  %v2067 = vmul.f32 %v1379, %v2051
  %v2068 = vpack.c.bf16 %v2053, %v2052
  %v2069 = vpack.c.bf16 %v2055, %v2054
  %v2070 = vpack.c.bf16 %v2057, %v2056
  %v2071 = vpack.c.bf16 %v2059, %v2058
  %v2072 = vpack.c.bf16 %v2061, %v2060
  %v2073 = vpack.c.bf16 %v2063, %v2062
  %v2074 = vpack.c.bf16 %v2065, %v2064
  %v2075 = vpack.c.bf16 %v2067, %v2066
  %v2076 = vld [vmem:[%s6] sm:$0xf]
  %v2077 = vld [vmem:[%s6 + $0x4] sm:$0xf]
  %v2078 = vld [vmem:[%s6 + $0x8] sm:$0xf]
  %v2079 = vld [vmem:[%s6 + $0xc] sm:$0xf]
  %v2080 = vld [vmem:[%s7] sm:$0x1]
  %v2082 = vperm.slane %v2080, 0
  %v2088 = vunpack.c.l.b16 %v2076
  %v2089 = vunpack.c.l.b16 %v2077
  %v2090 = vunpack.c.l.b16 %v2078
  %v2091 = vunpack.c.l.b16 %v2079
  %v2092 = vpack.c.b16 %v2089, %v2088
  %v2093 = vpack.c.b16 %v2091, %v2090
  %v2097 = vsel %vm243, %v2068, 0
  %v2100 = vsel %vm243, %v2069, 0
  %v2103 = vsel %vm243, %v2070, 0
  %v2106 = vsel %vm243, %v2071, 0
  %v2109 = vsel %vm243, %v2072, 0
  %v2112 = vsel %vm243, %v2073, 0
  %v2115 = vsel %vm243, %v2074, 0
  %v2118 = vsel %vm243, %v2075, 0
  %2120 = vmatpush.bf16.msra.mxu0 0
  %2121 = vmatpush.bf16.msra.mxu0 0
  %2122 = vmatpush.bf16.msra.mxu0 0
  %2123 = vmatpush.bf16.msra.mxu0 0
  %2124 = vmatpush.bf16.msra.mxu0 0
  %2125 = vmatpush.bf16.msra.mxu0 0
  %2126 = vmatpush.bf16.msra.mxu0 %v2093
  %2127 = vmatpush.bf16.msra.mxu0 %v2092
  %2128 = vmatmul.bf16.gmra.mxu0 %v2097
  %v2129 = vpop.f32.mrf.mxu0
  %v2130 = vadd.f32 %v2082, %v2129
  %v2131 = vpop.f32.mrf.mxu0
  %v2132 = vadd.f32 %v2082, %v2131
  %2133 = vmatmul.bf16.gmra.mxu0 %v2100
  %v2134 = vpop.f32.mrf.mxu0
  %v2135 = vadd.f32 %v2082, %v2134
  %v2136 = vpop.f32.mrf.mxu0
  %v2137 = vadd.f32 %v2082, %v2136
  %2138 = vmatmul.bf16.gmra.mxu0 %v2103
  %v2139 = vpop.f32.mrf.mxu0
  %v2140 = vadd.f32 %v2082, %v2139
  %v2141 = vpop.f32.mrf.mxu0
  %v2142 = vadd.f32 %v2082, %v2141
  %2143 = vmatmul.bf16.gmra.mxu0 %v2106
  %v2144 = vpop.f32.mrf.mxu0
  %v2145 = vadd.f32 %v2082, %v2144
  %v2146 = vpop.f32.mrf.mxu0
  %v2147 = vadd.f32 %v2082, %v2146
  %2148 = vmatmul.bf16.gmra.mxu0 %v2109
  %v2149 = vpop.f32.mrf.mxu0
  %v2150 = vadd.f32 %v2082, %v2149
  %v2151 = vpop.f32.mrf.mxu0
  %v2152 = vadd.f32 %v2082, %v2151
  %2153 = vmatmul.bf16.gmra.mxu0 %v2112
  %v2154 = vpop.f32.mrf.mxu0
  %v2155 = vadd.f32 %v2082, %v2154
  %v2156 = vpop.f32.mrf.mxu0
  %v2157 = vadd.f32 %v2082, %v2156
  %2158 = vmatmul.bf16.gmra.mxu0 %v2115
  %v2159 = vpop.f32.mrf.mxu0
  %v2160 = vadd.f32 %v2082, %v2159
  %v2161 = vpop.f32.mrf.mxu0
  %v2162 = vadd.f32 %v2082, %v2161
  %2163 = vmatmul.bf16.gmra.mxu0 %v2118
  %v2164 = vpop.f32.mrf.mxu0
  %v2165 = vadd.f32 %v2082, %v2164
  %v2166 = vpop.f32.mrf.mxu0
  %v2167 = vadd.f32 %v2082, %v2166
  %2168 = vdwg.mxu0
  %v2169 = vmul.f32 %v2130, 0.5
  %v2170 = vmul.f32 %v2132, 0.5
  %v2171 = vmul.f32 %v2135, 0.5
  %v2172 = vmul.f32 %v2137, 0.5
  %v2173 = vmul.f32 %v2140, 0.5
  %v2174 = vmul.f32 %v2142, 0.5
  %v2175 = vmul.f32 %v2145, 0.5
  %v2176 = vmul.f32 %v2147, 0.5
  %v2177 = vmul.f32 %v2150, 0.5
  %v2178 = vmul.f32 %v2152, 0.5
  %v2179 = vmul.f32 %v2155, 0.5
  %v2180 = vmul.f32 %v2157, 0.5
  %v2181 = vmul.f32 %v2160, 0.5
  %v2182 = vmul.f32 %v2162, 0.5
  %v2183 = vmul.f32 %v2165, 0.5
  %v2184 = vmul.f32 %v2167, 0.5
  %v2185 = vmul.f32 %v2130, 0.70710677
  %v2186 = vmul.f32 %v2132, 0.70710677
  %v2187 = vmul.f32 %v2135, 0.70710677
  %v2188 = vmul.f32 %v2137, 0.70710677
  %v2189 = vmul.f32 %v2140, 0.70710677
  %v2190 = vmul.f32 %v2142, 0.70710677
  %v2191 = vmul.f32 %v2145, 0.70710677
  %v2192 = vmul.f32 %v2147, 0.70710677
  %v2193 = vmul.f32 %v2150, 0.70710677
  %v2194 = vmul.f32 %v2152, 0.70710677
  %v2195 = vmul.f32 %v2155, 0.70710677
  %v2196 = vmul.f32 %v2157, 0.70710677
  %v2197 = vmul.f32 %v2160, 0.70710677
  %v2198 = vmul.f32 %v2162, 0.70710677
  %v2199 = vmul.f32 %v2165, 0.70710677
  %v2200 = vmul.f32 %v2167, 0.70710677
  %v2201 = vmul.f32 %v2185, %v2185
  %v2202 = vmin.f32 16.0, %v2201
  %v2203 = vmul.f32 %v2202, 2.1237322e-06
  %v2204 = vadd.f32 %v2203, 0.00028619796
  %v2205 = vmul.f32 %v2202, %v2204
  %v2206 = vadd.f32 %v2205, 0.0036580483
  %v2207 = vmul.f32 %v2202, %v2206
  %v2208 = vadd.f32 %v2207, 0.05243302
  %v2209 = vmul.f32 %v2202, %v2208
  %v2210 = vadd.f32 %v2209, 0.18741608
  %v2211 = vmul.f32 %v2202, %v2210
  %v2212 = vadd.f32 %v2211, 1.1283791
  %v2213 = vmul.f32 %v2185, %v2212
  %v2214 = vmul.f32 %v2202, 3.8918573e-05
  %v2215 = vadd.f32 %v2214, 0.001143296
  %v2216 = vmul.f32 %v2202, %v2215
  %v2217 = vadd.f32 %v2216, 0.014752088
  %v2218 = vmul.f32 %v2202, %v2217
  %v2219 = vadd.f32 %v2218, 0.112945676
  %v2220 = vmul.f32 %v2202, %v2219
  %v2221 = vadd.f32 %v2220, 0.4994258
  %v2222 = vmul.f32 %v2202, %v2221
  %v2223 = vadd.f32 %v2222, 1.0
  %v2224 = vrcp.pop %v2223
  %v2225 = vmul.f32 %v2223, %v2224
  %v2226 = vsub.f32 1.0, %v2225
  %v2227 = vmul.f32 %v2224, %v2226
  %v2228 = vadd.f32 %v2224, %v2227
  %vm2229 = vweird.f32 %v2223
  %vm2230 = vweird.f32 %v2224
  %vm2231 = vmor %vm2229, %vm2230
  %v2232 = vsel %vm2231, %v2224, %v2228
  %v2233 = vand.u32 2147483647, %v2223
  %vm2234 = vcmp.eq.f32.partialorder %v2233, 8.507059e+37
  %v2235 = vand.u32 %v2223, 2147483648
  %v2236 = vor.u32 1.1754944e-38, %v2235
  %v2237 = vsel %vm2234, %v2236, %v2232
  %v2238 = vmul.f32 %v2213, %v2237
  %v2239 = vmin.f32 %v2238, 1.0
  %v2240 = vmax.f32 %v2239, -1.0
  %v2241 = vmul.f32 %v2186, %v2186
  %v2242 = vmin.f32 16.0, %v2241
  %v2243 = vmul.f32 %v2242, 2.1237322e-06
  %v2244 = vadd.f32 %v2243, 0.00028619796
  %v2245 = vmul.f32 %v2242, %v2244
  %v2246 = vadd.f32 %v2245, 0.0036580483
  %v2247 = vmul.f32 %v2242, %v2246
  %v2248 = vadd.f32 %v2247, 0.05243302
  %v2249 = vmul.f32 %v2242, %v2248
  %v2250 = vadd.f32 %v2249, 0.18741608
  %v2251 = vmul.f32 %v2242, %v2250
  %v2252 = vadd.f32 %v2251, 1.1283791
  %v2253 = vmul.f32 %v2186, %v2252
  %v2254 = vmul.f32 %v2242, 3.8918573e-05
  %v2255 = vadd.f32 %v2254, 0.001143296
  %v2256 = vmul.f32 %v2242, %v2255
  %v2257 = vadd.f32 %v2256, 0.014752088
  %v2258 = vmul.f32 %v2242, %v2257
  %v2259 = vadd.f32 %v2258, 0.112945676
  %v2260 = vmul.f32 %v2242, %v2259
  %v2261 = vadd.f32 %v2260, 0.4994258
  %v2262 = vmul.f32 %v2242, %v2261
  %v2263 = vadd.f32 %v2262, 1.0
  %v2264 = vrcp.pop %v2263
  %v2265 = vmul.f32 %v2263, %v2264
  %v2266 = vsub.f32 1.0, %v2265
  %v2267 = vmul.f32 %v2264, %v2266
  %v2268 = vadd.f32 %v2264, %v2267
  %vm2269 = vweird.f32 %v2263
  %vm2270 = vweird.f32 %v2264
  %vm2271 = vmor %vm2269, %vm2270
  %v2272 = vsel %vm2271, %v2264, %v2268
  %v2273 = vand.u32 2147483647, %v2263
  %vm2274 = vcmp.eq.f32.partialorder %v2273, 8.507059e+37
  %v2275 = vand.u32 %v2263, 2147483648
  %v2276 = vor.u32 1.1754944e-38, %v2275
  %v2277 = vsel %vm2274, %v2276, %v2272
  %v2278 = vmul.f32 %v2253, %v2277
  %v2279 = vmin.f32 %v2278, 1.0
  %v2280 = vmax.f32 %v2279, -1.0
  %v2281 = vmul.f32 %v2187, %v2187
  %v2282 = vmin.f32 16.0, %v2281
  %v2283 = vmul.f32 %v2282, 2.1237322e-06
  %v2284 = vadd.f32 %v2283, 0.00028619796
  %v2285 = vmul.f32 %v2282, %v2284
  %v2286 = vadd.f32 %v2285, 0.0036580483
  %v2287 = vmul.f32 %v2282, %v2286
  %v2288 = vadd.f32 %v2287, 0.05243302
  %v2289 = vmul.f32 %v2282, %v2288
  %v2290 = vadd.f32 %v2289, 0.18741608
  %v2291 = vmul.f32 %v2282, %v2290
  %v2292 = vadd.f32 %v2291, 1.1283791
  %v2293 = vmul.f32 %v2187, %v2292
  %v2294 = vmul.f32 %v2282, 3.8918573e-05
  %v2295 = vadd.f32 %v2294, 0.001143296
  %v2296 = vmul.f32 %v2282, %v2295
  %v2297 = vadd.f32 %v2296, 0.014752088
  %v2298 = vmul.f32 %v2282, %v2297
  %v2299 = vadd.f32 %v2298, 0.112945676
  %v2300 = vmul.f32 %v2282, %v2299
  %v2301 = vadd.f32 %v2300, 0.4994258
  %v2302 = vmul.f32 %v2282, %v2301
  %v2303 = vadd.f32 %v2302, 1.0
  %v2304 = vrcp.pop %v2303
  %v2305 = vmul.f32 %v2303, %v2304
  %v2306 = vsub.f32 1.0, %v2305
  %v2307 = vmul.f32 %v2304, %v2306
  %v2308 = vadd.f32 %v2304, %v2307
  %vm2309 = vweird.f32 %v2303
  %vm2310 = vweird.f32 %v2304
  %vm2311 = vmor %vm2309, %vm2310
  %v2312 = vsel %vm2311, %v2304, %v2308
  %v2313 = vand.u32 2147483647, %v2303
  %vm2314 = vcmp.eq.f32.partialorder %v2313, 8.507059e+37
  %v2315 = vand.u32 %v2303, 2147483648
  %v2316 = vor.u32 1.1754944e-38, %v2315
  %v2317 = vsel %vm2314, %v2316, %v2312
  %v2318 = vmul.f32 %v2293, %v2317
  %v2319 = vmin.f32 %v2318, 1.0
  %v2320 = vmax.f32 %v2319, -1.0
  %v2321 = vmul.f32 %v2188, %v2188
  %v2322 = vmin.f32 16.0, %v2321
  %v2323 = vmul.f32 %v2322, 2.1237322e-06
  %v2324 = vadd.f32 %v2323, 0.00028619796
  %v2325 = vmul.f32 %v2322, %v2324
  %v2326 = vadd.f32 %v2325, 0.0036580483
  %v2327 = vmul.f32 %v2322, %v2326
  %v2328 = vadd.f32 %v2327, 0.05243302
  %v2329 = vmul.f32 %v2322, %v2328
  %v2330 = vadd.f32 %v2329, 0.18741608
  %v2331 = vmul.f32 %v2322, %v2330
  %v2332 = vadd.f32 %v2331, 1.1283791
  %v2333 = vmul.f32 %v2188, %v2332
  %v2334 = vmul.f32 %v2322, 3.8918573e-05
  %v2335 = vadd.f32 %v2334, 0.001143296
  %v2336 = vmul.f32 %v2322, %v2335
  %v2337 = vadd.f32 %v2336, 0.014752088
  %v2338 = vmul.f32 %v2322, %v2337
  %v2339 = vadd.f32 %v2338, 0.112945676
  %v2340 = vmul.f32 %v2322, %v2339
  %v2341 = vadd.f32 %v2340, 0.4994258
  %v2342 = vmul.f32 %v2322, %v2341
  %v2343 = vadd.f32 %v2342, 1.0
  %v2344 = vrcp.pop %v2343
  %v2345 = vmul.f32 %v2343, %v2344
  %v2346 = vsub.f32 1.0, %v2345
  %v2347 = vmul.f32 %v2344, %v2346
  %v2348 = vadd.f32 %v2344, %v2347
  %vm2349 = vweird.f32 %v2343
  %vm2350 = vweird.f32 %v2344
  %vm2351 = vmor %vm2349, %vm2350
  %v2352 = vsel %vm2351, %v2344, %v2348
  %v2353 = vand.u32 2147483647, %v2343
  %vm2354 = vcmp.eq.f32.partialorder %v2353, 8.507059e+37
  %v2355 = vand.u32 %v2343, 2147483648
  %v2356 = vor.u32 1.1754944e-38, %v2355
  %v2357 = vsel %vm2354, %v2356, %v2352
  %v2358 = vmul.f32 %v2333, %v2357
  %v2359 = vmin.f32 %v2358, 1.0
  %v2360 = vmax.f32 %v2359, -1.0
  %v2361 = vmul.f32 %v2189, %v2189
  %v2362 = vmin.f32 16.0, %v2361
  %v2363 = vmul.f32 %v2362, 2.1237322e-06
  %v2364 = vadd.f32 %v2363, 0.00028619796
  %v2365 = vmul.f32 %v2362, %v2364
  %v2366 = vadd.f32 %v2365, 0.0036580483
  %v2367 = vmul.f32 %v2362, %v2366
  %v2368 = vadd.f32 %v2367, 0.05243302
  %v2369 = vmul.f32 %v2362, %v2368
  %v2370 = vadd.f32 %v2369, 0.18741608
  %v2371 = vmul.f32 %v2362, %v2370
  %v2372 = vadd.f32 %v2371, 1.1283791
  %v2373 = vmul.f32 %v2189, %v2372
  %v2374 = vmul.f32 %v2362, 3.8918573e-05
  %v2375 = vadd.f32 %v2374, 0.001143296
  %v2376 = vmul.f32 %v2362, %v2375
  %v2377 = vadd.f32 %v2376, 0.014752088
  %v2378 = vmul.f32 %v2362, %v2377
  %v2379 = vadd.f32 %v2378, 0.112945676
  %v2380 = vmul.f32 %v2362, %v2379
  %v2381 = vadd.f32 %v2380, 0.4994258
  %v2382 = vmul.f32 %v2362, %v2381
  %v2383 = vadd.f32 %v2382, 1.0
  %v2384 = vrcp.pop %v2383
  %v2385 = vmul.f32 %v2383, %v2384
  %v2386 = vsub.f32 1.0, %v2385
  %v2387 = vmul.f32 %v2384, %v2386
  %v2388 = vadd.f32 %v2384, %v2387
  %vm2389 = vweird.f32 %v2383
  %vm2390 = vweird.f32 %v2384
  %vm2391 = vmor %vm2389, %vm2390
  %v2392 = vsel %vm2391, %v2384, %v2388
  %v2393 = vand.u32 2147483647, %v2383
  %vm2394 = vcmp.eq.f32.partialorder %v2393, 8.507059e+37
  %v2395 = vand.u32 %v2383, 2147483648
  %v2396 = vor.u32 1.1754944e-38, %v2395
  %v2397 = vsel %vm2394, %v2396, %v2392
  %v2398 = vmul.f32 %v2373, %v2397
  %v2399 = vmin.f32 %v2398, 1.0
  %v2400 = vmax.f32 %v2399, -1.0
  %v2401 = vmul.f32 %v2190, %v2190
  %v2402 = vmin.f32 16.0, %v2401
  %v2403 = vmul.f32 %v2402, 2.1237322e-06
  %v2404 = vadd.f32 %v2403, 0.00028619796
  %v2405 = vmul.f32 %v2402, %v2404
  %v2406 = vadd.f32 %v2405, 0.0036580483
  %v2407 = vmul.f32 %v2402, %v2406
  %v2408 = vadd.f32 %v2407, 0.05243302
  %v2409 = vmul.f32 %v2402, %v2408
  %v2410 = vadd.f32 %v2409, 0.18741608
  %v2411 = vmul.f32 %v2402, %v2410
  %v2412 = vadd.f32 %v2411, 1.1283791
  %v2413 = vmul.f32 %v2190, %v2412
  %v2414 = vmul.f32 %v2402, 3.8918573e-05
  %v2415 = vadd.f32 %v2414, 0.001143296
  %v2416 = vmul.f32 %v2402, %v2415
  %v2417 = vadd.f32 %v2416, 0.014752088
  %v2418 = vmul.f32 %v2402, %v2417
  %v2419 = vadd.f32 %v2418, 0.112945676
  %v2420 = vmul.f32 %v2402, %v2419
  %v2421 = vadd.f32 %v2420, 0.4994258
  %v2422 = vmul.f32 %v2402, %v2421
  %v2423 = vadd.f32 %v2422, 1.0
  %v2424 = vrcp.pop %v2423
  %v2425 = vmul.f32 %v2423, %v2424
  %v2426 = vsub.f32 1.0, %v2425
  %v2427 = vmul.f32 %v2424, %v2426
  %v2428 = vadd.f32 %v2424, %v2427
  %vm2429 = vweird.f32 %v2423
  %vm2430 = vweird.f32 %v2424
  %vm2431 = vmor %vm2429, %vm2430
  %v2432 = vsel %vm2431, %v2424, %v2428
  %v2433 = vand.u32 2147483647, %v2423
  %vm2434 = vcmp.eq.f32.partialorder %v2433, 8.507059e+37
  %v2435 = vand.u32 %v2423, 2147483648
  %v2436 = vor.u32 1.1754944e-38, %v2435
  %v2437 = vsel %vm2434, %v2436, %v2432
  %v2438 = vmul.f32 %v2413, %v2437
  %v2439 = vmin.f32 %v2438, 1.0
  %v2440 = vmax.f32 %v2439, -1.0
  %v2441 = vmul.f32 %v2191, %v2191
  %v2442 = vmin.f32 16.0, %v2441
  %v2443 = vmul.f32 %v2442, 2.1237322e-06
  %v2444 = vadd.f32 %v2443, 0.00028619796
  %v2445 = vmul.f32 %v2442, %v2444
  %v2446 = vadd.f32 %v2445, 0.0036580483
  %v2447 = vmul.f32 %v2442, %v2446
  %v2448 = vadd.f32 %v2447, 0.05243302
  %v2449 = vmul.f32 %v2442, %v2448
  %v2450 = vadd.f32 %v2449, 0.18741608
  %v2451 = vmul.f32 %v2442, %v2450
  %v2452 = vadd.f32 %v2451, 1.1283791
  %v2453 = vmul.f32 %v2191, %v2452
  %v2454 = vmul.f32 %v2442, 3.8918573e-05
  %v2455 = vadd.f32 %v2454, 0.001143296
  %v2456 = vmul.f32 %v2442, %v2455
  %v2457 = vadd.f32 %v2456, 0.014752088
  %v2458 = vmul.f32 %v2442, %v2457
  %v2459 = vadd.f32 %v2458, 0.112945676
  %v2460 = vmul.f32 %v2442, %v2459
  %v2461 = vadd.f32 %v2460, 0.4994258
  %v2462 = vmul.f32 %v2442, %v2461
  %v2463 = vadd.f32 %v2462, 1.0
  %v2464 = vrcp.pop %v2463
  %v2465 = vmul.f32 %v2463, %v2464
  %v2466 = vsub.f32 1.0, %v2465
  %v2467 = vmul.f32 %v2464, %v2466
  %v2468 = vadd.f32 %v2464, %v2467
  %vm2469 = vweird.f32 %v2463
  %vm2470 = vweird.f32 %v2464
  %vm2471 = vmor %vm2469, %vm2470
  %v2472 = vsel %vm2471, %v2464, %v2468
  %v2473 = vand.u32 2147483647, %v2463
  %vm2474 = vcmp.eq.f32.partialorder %v2473, 8.507059e+37
  %v2475 = vand.u32 %v2463, 2147483648
  %v2476 = vor.u32 1.1754944e-38, %v2475
  %v2477 = vsel %vm2474, %v2476, %v2472
  %v2478 = vmul.f32 %v2453, %v2477
  %v2479 = vmin.f32 %v2478, 1.0
  %v2480 = vmax.f32 %v2479, -1.0
  %v2481 = vmul.f32 %v2192, %v2192
  %v2482 = vmin.f32 16.0, %v2481
  %v2483 = vmul.f32 %v2482, 2.1237322e-06
  %v2484 = vadd.f32 %v2483, 0.00028619796
  %v2485 = vmul.f32 %v2482, %v2484
  %v2486 = vadd.f32 %v2485, 0.0036580483
  %v2487 = vmul.f32 %v2482, %v2486
  %v2488 = vadd.f32 %v2487, 0.05243302
  %v2489 = vmul.f32 %v2482, %v2488
  %v2490 = vadd.f32 %v2489, 0.18741608
  %v2491 = vmul.f32 %v2482, %v2490
  %v2492 = vadd.f32 %v2491, 1.1283791
  %v2493 = vmul.f32 %v2192, %v2492
  %v2494 = vmul.f32 %v2482, 3.8918573e-05
  %v2495 = vadd.f32 %v2494, 0.001143296
  %v2496 = vmul.f32 %v2482, %v2495
  %v2497 = vadd.f32 %v2496, 0.014752088
  %v2498 = vmul.f32 %v2482, %v2497
  %v2499 = vadd.f32 %v2498, 0.112945676
  %v2500 = vmul.f32 %v2482, %v2499
  %v2501 = vadd.f32 %v2500, 0.4994258
  %v2502 = vmul.f32 %v2482, %v2501
  %v2503 = vadd.f32 %v2502, 1.0
  %v2504 = vrcp.pop %v2503
  %v2505 = vmul.f32 %v2503, %v2504
  %v2506 = vsub.f32 1.0, %v2505
  %v2507 = vmul.f32 %v2504, %v2506
  %v2508 = vadd.f32 %v2504, %v2507
  %vm2509 = vweird.f32 %v2503
  %vm2510 = vweird.f32 %v2504
  %vm2511 = vmor %vm2509, %vm2510
  %v2512 = vsel %vm2511, %v2504, %v2508
  %v2513 = vand.u32 2147483647, %v2503
  %vm2514 = vcmp.eq.f32.partialorder %v2513, 8.507059e+37
  %v2515 = vand.u32 %v2503, 2147483648
  %v2516 = vor.u32 1.1754944e-38, %v2515
  %v2517 = vsel %vm2514, %v2516, %v2512
  %v2518 = vmul.f32 %v2493, %v2517
  %v2519 = vmin.f32 %v2518, 1.0
  %v2520 = vmax.f32 %v2519, -1.0
  %v2521 = vmul.f32 %v2193, %v2193
  %v2522 = vmin.f32 16.0, %v2521
  %v2523 = vmul.f32 %v2522, 2.1237322e-06
  %v2524 = vadd.f32 %v2523, 0.00028619796
  %v2525 = vmul.f32 %v2522, %v2524
  %v2526 = vadd.f32 %v2525, 0.0036580483
  %v2527 = vmul.f32 %v2522, %v2526
  %v2528 = vadd.f32 %v2527, 0.05243302
  %v2529 = vmul.f32 %v2522, %v2528
  %v2530 = vadd.f32 %v2529, 0.18741608
  %v2531 = vmul.f32 %v2522, %v2530
  %v2532 = vadd.f32 %v2531, 1.1283791
  %v2533 = vmul.f32 %v2193, %v2532
  %v2534 = vmul.f32 %v2522, 3.8918573e-05
  %v2535 = vadd.f32 %v2534, 0.001143296
  %v2536 = vmul.f32 %v2522, %v2535
  %v2537 = vadd.f32 %v2536, 0.014752088
  %v2538 = vmul.f32 %v2522, %v2537
  %v2539 = vadd.f32 %v2538, 0.112945676
  %v2540 = vmul.f32 %v2522, %v2539
  %v2541 = vadd.f32 %v2540, 0.4994258
  %v2542 = vmul.f32 %v2522, %v2541
  %v2543 = vadd.f32 %v2542, 1.0
  %v2544 = vrcp.pop %v2543
  %v2545 = vmul.f32 %v2543, %v2544
  %v2546 = vsub.f32 1.0, %v2545
  %v2547 = vmul.f32 %v2544, %v2546
  %v2548 = vadd.f32 %v2544, %v2547
  %vm2549 = vweird.f32 %v2543
  %vm2550 = vweird.f32 %v2544
  %vm2551 = vmor %vm2549, %vm2550
  %v2552 = vsel %vm2551, %v2544, %v2548
  %v2553 = vand.u32 2147483647, %v2543
  %vm2554 = vcmp.eq.f32.partialorder %v2553, 8.507059e+37
  %v2555 = vand.u32 %v2543, 2147483648
  %v2556 = vor.u32 1.1754944e-38, %v2555
  %v2557 = vsel %vm2554, %v2556, %v2552
  %v2558 = vmul.f32 %v2533, %v2557
  %v2559 = vmin.f32 %v2558, 1.0
  %v2560 = vmax.f32 %v2559, -1.0
  %v2561 = vmul.f32 %v2194, %v2194
  %v2562 = vmin.f32 16.0, %v2561
  %v2563 = vmul.f32 %v2562, 2.1237322e-06
  %v2564 = vadd.f32 %v2563, 0.00028619796
  %v2565 = vmul.f32 %v2562, %v2564
  %v2566 = vadd.f32 %v2565, 0.0036580483
  %v2567 = vmul.f32 %v2562, %v2566
  %v2568 = vadd.f32 %v2567, 0.05243302
  %v2569 = vmul.f32 %v2562, %v2568
  %v2570 = vadd.f32 %v2569, 0.18741608
  %v2571 = vmul.f32 %v2562, %v2570
  %v2572 = vadd.f32 %v2571, 1.1283791
  %v2573 = vmul.f32 %v2194, %v2572
  %v2574 = vmul.f32 %v2562, 3.8918573e-05
  %v2575 = vadd.f32 %v2574, 0.001143296
  %v2576 = vmul.f32 %v2562, %v2575
  %v2577 = vadd.f32 %v2576, 0.014752088
  %v2578 = vmul.f32 %v2562, %v2577
  %v2579 = vadd.f32 %v2578, 0.112945676
  %v2580 = vmul.f32 %v2562, %v2579
  %v2581 = vadd.f32 %v2580, 0.4994258
  %v2582 = vmul.f32 %v2562, %v2581
  %v2583 = vadd.f32 %v2582, 1.0
  %v2584 = vrcp.pop %v2583
  %v2585 = vmul.f32 %v2583, %v2584
  %v2586 = vsub.f32 1.0, %v2585
  %v2587 = vmul.f32 %v2584, %v2586
  %v2588 = vadd.f32 %v2584, %v2587
  %vm2589 = vweird.f32 %v2583
  %vm2590 = vweird.f32 %v2584
  %vm2591 = vmor %vm2589, %vm2590
  %v2592 = vsel %vm2591, %v2584, %v2588
  %v2593 = vand.u32 2147483647, %v2583
  %vm2594 = vcmp.eq.f32.partialorder %v2593, 8.507059e+37
  %v2595 = vand.u32 %v2583, 2147483648
  %v2596 = vor.u32 1.1754944e-38, %v2595
  %v2597 = vsel %vm2594, %v2596, %v2592
  %v2598 = vmul.f32 %v2573, %v2597
  %v2599 = vmin.f32 %v2598, 1.0
  %v2600 = vmax.f32 %v2599, -1.0
  %v2601 = vmul.f32 %v2195, %v2195
  %v2602 = vmin.f32 16.0, %v2601
  %v2603 = vmul.f32 %v2602, 2.1237322e-06
  %v2604 = vadd.f32 %v2603, 0.00028619796
  %v2605 = vmul.f32 %v2602, %v2604
  %v2606 = vadd.f32 %v2605, 0.0036580483
  %v2607 = vmul.f32 %v2602, %v2606
  %v2608 = vadd.f32 %v2607, 0.05243302
  %v2609 = vmul.f32 %v2602, %v2608
  %v2610 = vadd.f32 %v2609, 0.18741608
  %v2611 = vmul.f32 %v2602, %v2610
  %v2612 = vadd.f32 %v2611, 1.1283791
  %v2613 = vmul.f32 %v2195, %v2612
  %v2614 = vmul.f32 %v2602, 3.8918573e-05
  %v2615 = vadd.f32 %v2614, 0.001143296
  %v2616 = vmul.f32 %v2602, %v2615
  %v2617 = vadd.f32 %v2616, 0.014752088
  %v2618 = vmul.f32 %v2602, %v2617
  %v2619 = vadd.f32 %v2618, 0.112945676
  %v2620 = vmul.f32 %v2602, %v2619
  %v2621 = vadd.f32 %v2620, 0.4994258
  %v2622 = vmul.f32 %v2602, %v2621
  %v2623 = vadd.f32 %v2622, 1.0
  %v2624 = vrcp.pop %v2623
  %v2625 = vmul.f32 %v2623, %v2624
  %v2626 = vsub.f32 1.0, %v2625
  %v2627 = vmul.f32 %v2624, %v2626
  %v2628 = vadd.f32 %v2624, %v2627
  %vm2629 = vweird.f32 %v2623
  %vm2630 = vweird.f32 %v2624
  %vm2631 = vmor %vm2629, %vm2630
  %v2632 = vsel %vm2631, %v2624, %v2628
  %v2633 = vand.u32 2147483647, %v2623
  %vm2634 = vcmp.eq.f32.partialorder %v2633, 8.507059e+37
  %v2635 = vand.u32 %v2623, 2147483648
  %v2636 = vor.u32 1.1754944e-38, %v2635
  %v2637 = vsel %vm2634, %v2636, %v2632
  %v2638 = vmul.f32 %v2613, %v2637
  %v2639 = vmin.f32 %v2638, 1.0
  %v2640 = vmax.f32 %v2639, -1.0
  %v2641 = vmul.f32 %v2196, %v2196
  %v2642 = vmin.f32 16.0, %v2641
  %v2643 = vmul.f32 %v2642, 2.1237322e-06
  %v2644 = vadd.f32 %v2643, 0.00028619796
  %v2645 = vmul.f32 %v2642, %v2644
  %v2646 = vadd.f32 %v2645, 0.0036580483
  %v2647 = vmul.f32 %v2642, %v2646
  %v2648 = vadd.f32 %v2647, 0.05243302
  %v2649 = vmul.f32 %v2642, %v2648
  %v2650 = vadd.f32 %v2649, 0.18741608
  %v2651 = vmul.f32 %v2642, %v2650
  %v2652 = vadd.f32 %v2651, 1.1283791
  %v2653 = vmul.f32 %v2196, %v2652
  %v2654 = vmul.f32 %v2642, 3.8918573e-05
  %v2655 = vadd.f32 %v2654, 0.001143296
  %v2656 = vmul.f32 %v2642, %v2655
  %v2657 = vadd.f32 %v2656, 0.014752088
  %v2658 = vmul.f32 %v2642, %v2657
  %v2659 = vadd.f32 %v2658, 0.112945676
  %v2660 = vmul.f32 %v2642, %v2659
  %v2661 = vadd.f32 %v2660, 0.4994258
  %v2662 = vmul.f32 %v2642, %v2661
  %v2663 = vadd.f32 %v2662, 1.0
  %v2664 = vrcp.pop %v2663
  %v2665 = vmul.f32 %v2663, %v2664
  %v2666 = vsub.f32 1.0, %v2665
  %v2667 = vmul.f32 %v2664, %v2666
  %v2668 = vadd.f32 %v2664, %v2667
  %vm2669 = vweird.f32 %v2663
  %vm2670 = vweird.f32 %v2664
  %vm2671 = vmor %vm2669, %vm2670
  %v2672 = vsel %vm2671, %v2664, %v2668
  %v2673 = vand.u32 2147483647, %v2663
  %vm2674 = vcmp.eq.f32.partialorder %v2673, 8.507059e+37
  %v2675 = vand.u32 %v2663, 2147483648
  %v2676 = vor.u32 1.1754944e-38, %v2675
  %v2677 = vsel %vm2674, %v2676, %v2672
  %v2678 = vmul.f32 %v2653, %v2677
  %v2679 = vmin.f32 %v2678, 1.0
  %v2680 = vmax.f32 %v2679, -1.0
  %v2681 = vmul.f32 %v2197, %v2197
  %v2682 = vmin.f32 16.0, %v2681
  %v2683 = vmul.f32 %v2682, 2.1237322e-06
  %v2684 = vadd.f32 %v2683, 0.00028619796
  %v2685 = vmul.f32 %v2682, %v2684
  %v2686 = vadd.f32 %v2685, 0.0036580483
  %v2687 = vmul.f32 %v2682, %v2686
  %v2688 = vadd.f32 %v2687, 0.05243302
  %v2689 = vmul.f32 %v2682, %v2688
  %v2690 = vadd.f32 %v2689, 0.18741608
  %v2691 = vmul.f32 %v2682, %v2690
  %v2692 = vadd.f32 %v2691, 1.1283791
  %v2693 = vmul.f32 %v2197, %v2692
  %v2694 = vmul.f32 %v2682, 3.8918573e-05
  %v2695 = vadd.f32 %v2694, 0.001143296
  %v2696 = vmul.f32 %v2682, %v2695
  %v2697 = vadd.f32 %v2696, 0.014752088
  %v2698 = vmul.f32 %v2682, %v2697
  %v2699 = vadd.f32 %v2698, 0.112945676
  %v2700 = vmul.f32 %v2682, %v2699
  %v2701 = vadd.f32 %v2700, 0.4994258
  %v2702 = vmul.f32 %v2682, %v2701
  %v2703 = vadd.f32 %v2702, 1.0
  %v2704 = vrcp.pop %v2703
  %v2705 = vmul.f32 %v2703, %v2704
  %v2706 = vsub.f32 1.0, %v2705
  %v2707 = vmul.f32 %v2704, %v2706
  %v2708 = vadd.f32 %v2704, %v2707
  %vm2709 = vweird.f32 %v2703
  %vm2710 = vweird.f32 %v2704
  %vm2711 = vmor %vm2709, %vm2710
  %v2712 = vsel %vm2711, %v2704, %v2708
  %v2713 = vand.u32 2147483647, %v2703
  %vm2714 = vcmp.eq.f32.partialorder %v2713, 8.507059e+37
  %v2715 = vand.u32 %v2703, 2147483648
  %v2716 = vor.u32 1.1754944e-38, %v2715
  %v2717 = vsel %vm2714, %v2716, %v2712
  %v2718 = vmul.f32 %v2693, %v2717
  %v2719 = vmin.f32 %v2718, 1.0
  %v2720 = vmax.f32 %v2719, -1.0
  %v2721 = vmul.f32 %v2198, %v2198
  %v2722 = vmin.f32 16.0, %v2721
  %v2723 = vmul.f32 %v2722, 2.1237322e-06
  %v2724 = vadd.f32 %v2723, 0.00028619796
  %v2725 = vmul.f32 %v2722, %v2724
  %v2726 = vadd.f32 %v2725, 0.0036580483
  %v2727 = vmul.f32 %v2722, %v2726
  %v2728 = vadd.f32 %v2727, 0.05243302
  %v2729 = vmul.f32 %v2722, %v2728
  %v2730 = vadd.f32 %v2729, 0.18741608
  %v2731 = vmul.f32 %v2722, %v2730
  %v2732 = vadd.f32 %v2731, 1.1283791
  %v2733 = vmul.f32 %v2198, %v2732
  %v2734 = vmul.f32 %v2722, 3.8918573e-05
  %v2735 = vadd.f32 %v2734, 0.001143296
  %v2736 = vmul.f32 %v2722, %v2735
  %v2737 = vadd.f32 %v2736, 0.014752088
  %v2738 = vmul.f32 %v2722, %v2737
  %v2739 = vadd.f32 %v2738, 0.112945676
  %v2740 = vmul.f32 %v2722, %v2739
  %v2741 = vadd.f32 %v2740, 0.4994258
  %v2742 = vmul.f32 %v2722, %v2741
  %v2743 = vadd.f32 %v2742, 1.0
  %v2744 = vrcp.pop %v2743
  %v2745 = vmul.f32 %v2743, %v2744
  %v2746 = vsub.f32 1.0, %v2745
  %v2747 = vmul.f32 %v2744, %v2746
  %v2748 = vadd.f32 %v2744, %v2747
  %vm2749 = vweird.f32 %v2743
  %vm2750 = vweird.f32 %v2744
  %vm2751 = vmor %vm2749, %vm2750
  %v2752 = vsel %vm2751, %v2744, %v2748
  %v2753 = vand.u32 2147483647, %v2743
  %vm2754 = vcmp.eq.f32.partialorder %v2753, 8.507059e+37
  %v2755 = vand.u32 %v2743, 2147483648
  %v2756 = vor.u32 1.1754944e-38, %v2755
  %v2757 = vsel %vm2754, %v2756, %v2752
  %v2758 = vmul.f32 %v2733, %v2757
  %v2759 = vmin.f32 %v2758, 1.0
  %v2760 = vmax.f32 %v2759, -1.0
  %v2761 = vmul.f32 %v2199, %v2199
  %v2762 = vmin.f32 16.0, %v2761
  %v2763 = vmul.f32 %v2762, 2.1237322e-06
  %v2764 = vadd.f32 %v2763, 0.00028619796
  %v2765 = vmul.f32 %v2762, %v2764
  %v2766 = vadd.f32 %v2765, 0.0036580483
  %v2767 = vmul.f32 %v2762, %v2766
  %v2768 = vadd.f32 %v2767, 0.05243302
  %v2769 = vmul.f32 %v2762, %v2768
  %v2770 = vadd.f32 %v2769, 0.18741608
  %v2771 = vmul.f32 %v2762, %v2770
  %v2772 = vadd.f32 %v2771, 1.1283791
  %v2773 = vmul.f32 %v2199, %v2772
  %v2774 = vmul.f32 %v2762, 3.8918573e-05
  %v2775 = vadd.f32 %v2774, 0.001143296
  %v2776 = vmul.f32 %v2762, %v2775
  %v2777 = vadd.f32 %v2776, 0.014752088
  %v2778 = vmul.f32 %v2762, %v2777
  %v2779 = vadd.f32 %v2778, 0.112945676
  %v2780 = vmul.f32 %v2762, %v2779
  %v2781 = vadd.f32 %v2780, 0.4994258
  %v2782 = vmul.f32 %v2762, %v2781
  %v2783 = vadd.f32 %v2782, 1.0
  %v2784 = vrcp.pop %v2783
  %v2785 = vmul.f32 %v2783, %v2784
  %v2786 = vsub.f32 1.0, %v2785
  %v2787 = vmul.f32 %v2784, %v2786
  %v2788 = vadd.f32 %v2784, %v2787
  %vm2789 = vweird.f32 %v2783
  %vm2790 = vweird.f32 %v2784
  %vm2791 = vmor %vm2789, %vm2790
  %v2792 = vsel %vm2791, %v2784, %v2788
  %v2793 = vand.u32 2147483647, %v2783
  %vm2794 = vcmp.eq.f32.partialorder %v2793, 8.507059e+37
  %v2795 = vand.u32 %v2783, 2147483648
  %v2796 = vor.u32 1.1754944e-38, %v2795
  %v2797 = vsel %vm2794, %v2796, %v2792
  %v2798 = vmul.f32 %v2773, %v2797
  %v2799 = vmin.f32 %v2798, 1.0
  %v2800 = vmax.f32 %v2799, -1.0
  %v2801 = vmul.f32 %v2200, %v2200
  %v2802 = vmin.f32 16.0, %v2801
  %v2803 = vmul.f32 %v2802, 2.1237322e-06
  %v2804 = vadd.f32 %v2803, 0.00028619796
  %v2805 = vmul.f32 %v2802, %v2804
  %v2806 = vadd.f32 %v2805, 0.0036580483
  %v2807 = vmul.f32 %v2802, %v2806
  %v2808 = vadd.f32 %v2807, 0.05243302
  %v2809 = vmul.f32 %v2802, %v2808
  %v2810 = vadd.f32 %v2809, 0.18741608
  %v2811 = vmul.f32 %v2802, %v2810
  %v2812 = vadd.f32 %v2811, 1.1283791
  %v2813 = vmul.f32 %v2200, %v2812
  %v2814 = vmul.f32 %v2802, 3.8918573e-05
  %v2815 = vadd.f32 %v2814, 0.001143296
  %v2816 = vmul.f32 %v2802, %v2815
  %v2817 = vadd.f32 %v2816, 0.014752088
  %v2818 = vmul.f32 %v2802, %v2817
  %v2819 = vadd.f32 %v2818, 0.112945676
  %v2820 = vmul.f32 %v2802, %v2819
  %v2821 = vadd.f32 %v2820, 0.4994258
  %v2822 = vmul.f32 %v2802, %v2821
  %v2823 = vadd.f32 %v2822, 1.0
  %v2824 = vrcp.pop %v2823
  %v2825 = vmul.f32 %v2823, %v2824
  %v2826 = vsub.f32 1.0, %v2825
  %v2827 = vmul.f32 %v2824, %v2826
  %v2828 = vadd.f32 %v2824, %v2827
  %vm2829 = vweird.f32 %v2823
  %vm2830 = vweird.f32 %v2824
  %vm2831 = vmor %vm2829, %vm2830
  %v2832 = vsel %vm2831, %v2824, %v2828
  %v2833 = vand.u32 2147483647, %v2823
  %vm2834 = vcmp.eq.f32.partialorder %v2833, 8.507059e+37
  %v2835 = vand.u32 %v2823, 2147483648
  %v2836 = vor.u32 1.1754944e-38, %v2835
  %v2837 = vsel %vm2834, %v2836, %v2832
  %v2838 = vmul.f32 %v2813, %v2837
  %v2839 = vmin.f32 %v2838, 1.0
  %v2840 = vmax.f32 %v2839, -1.0
  %v2841 = vadd.f32 %v2240, 1.0
  %v2842 = vadd.f32 %v2280, 1.0
  %v2843 = vadd.f32 %v2320, 1.0
  %v2844 = vadd.f32 %v2360, 1.0
  %v2845 = vadd.f32 %v2400, 1.0
  %v2846 = vadd.f32 %v2440, 1.0
  %v2847 = vadd.f32 %v2480, 1.0
  %v2848 = vadd.f32 %v2520, 1.0
  %v2849 = vadd.f32 %v2560, 1.0
  %v2850 = vadd.f32 %v2600, 1.0
  %v2851 = vadd.f32 %v2640, 1.0
  %v2852 = vadd.f32 %v2680, 1.0
  %v2853 = vadd.f32 %v2720, 1.0
  %v2854 = vadd.f32 %v2760, 1.0
  %v2855 = vadd.f32 %v2800, 1.0
  %v2856 = vadd.f32 %v2840, 1.0
  %v2857 = vmul.f32 %v2169, %v2841
  %v2858 = vmul.f32 %v2170, %v2842
  %v2859 = vmul.f32 %v2171, %v2843
  %v2860 = vmul.f32 %v2172, %v2844
  %v2861 = vmul.f32 %v2173, %v2845
  %v2862 = vmul.f32 %v2174, %v2846
  %v2863 = vmul.f32 %v2175, %v2847
  %v2864 = vmul.f32 %v2176, %v2848
  %v2865 = vmul.f32 %v2177, %v2849
  %v2866 = vmul.f32 %v2178, %v2850
  %v2867 = vmul.f32 %v2179, %v2851
  %v2868 = vmul.f32 %v2180, %v2852
  %v2869 = vmul.f32 %v2181, %v2853
  %v2870 = vmul.f32 %v2182, %v2854
  %v2871 = vmul.f32 %v2183, %v2855
  %v2872 = vmul.f32 %v2184, %v2856
  %v2873 = vld [vmem:[%s8] sm:$0x1]
  %v2875 = vperm.slane %v2873, 0
  %v2877 = vmul.f32 %v2857, %v2875
  %v2878 = vmul.f32 %v2858, %v2875
  %v2879 = vmul.f32 %v2859, %v2875
  %v2880 = vmul.f32 %v2860, %v2875
  %v2881 = vmul.f32 %v2861, %v2875
  %v2882 = vmul.f32 %v2862, %v2875
  %v2883 = vmul.f32 %v2863, %v2875
  %v2884 = vmul.f32 %v2864, %v2875
  %v2885 = vmul.f32 %v2865, %v2875
  %v2886 = vmul.f32 %v2866, %v2875
  %v2887 = vmul.f32 %v2867, %v2875
  %v2888 = vmul.f32 %v2868, %v2875
  %v2889 = vmul.f32 %v2869, %v2875
  %v2890 = vmul.f32 %v2870, %v2875
  %v2891 = vmul.f32 %v2871, %v2875
  %v2892 = vmul.f32 %v2872, %v2875
  %v2893 = vsel %vm198, %v2877, 0.0
  %2894 = vadd.xlane.f32.xlu0 %v2893
  %v2895 = vpop.xlane.xlu0 %2894
  %v2896 = vsel %vm198, %v2878, 0.0
  %2897 = vadd.xlane.f32.xlu0 %v2896
  %v2898 = vpop.xlane.xlu0 %2897
  %v2899 = vsel %vm198, %v2879, 0.0
  %2900 = vadd.xlane.f32.xlu0 %v2899
  %v2901 = vpop.xlane.xlu0 %2900
  %v2902 = vsel %vm198, %v2880, 0.0
  %2903 = vadd.xlane.f32.xlu0 %v2902
  %v2904 = vpop.xlane.xlu0 %2903
  %v2905 = vsel %vm198, %v2881, 0.0
  %2906 = vadd.xlane.f32.xlu0 %v2905
  %v2907 = vpop.xlane.xlu0 %2906
  %v2908 = vsel %vm198, %v2882, 0.0
  %2909 = vadd.xlane.f32.xlu0 %v2908
  %v2910 = vpop.xlane.xlu0 %2909
  %v2911 = vsel %vm198, %v2883, 0.0
  %2912 = vadd.xlane.f32.xlu0 %v2911
  %v2913 = vpop.xlane.xlu0 %2912
  %v2914 = vsel %vm198, %v2884, 0.0
  %2915 = vadd.xlane.f32.xlu0 %v2914
  %v2916 = vpop.xlane.xlu0 %2915
  %v2917 = vsel %vm198, %v2885, 0.0
  %2918 = vadd.xlane.f32.xlu0 %v2917
  %v2919 = vpop.xlane.xlu0 %2918
  %v2920 = vsel %vm198, %v2886, 0.0
  %2921 = vadd.xlane.f32.xlu0 %v2920
  %v2922 = vpop.xlane.xlu0 %2921
  %v2923 = vsel %vm198, %v2887, 0.0
  %2924 = vadd.xlane.f32.xlu0 %v2923
  %v2925 = vpop.xlane.xlu0 %2924
  %v2926 = vsel %vm198, %v2888, 0.0
  %2927 = vadd.xlane.f32.xlu0 %v2926
  %v2928 = vpop.xlane.xlu0 %2927
  %v2929 = vsel %vm198, %v2889, 0.0
  %2930 = vadd.xlane.f32.xlu0 %v2929
  %v2931 = vpop.xlane.xlu0 %2930
  %v2932 = vsel %vm198, %v2890, 0.0
  %2933 = vadd.xlane.f32.xlu0 %v2932
  %v2934 = vpop.xlane.xlu0 %2933
  %v2935 = vsel %vm198, %v2891, 0.0
  %2936 = vadd.xlane.f32.xlu0 %v2935
  %v2937 = vpop.xlane.xlu0 %2936
  %v2938 = vsel %vm198, %v2892, 0.0
  %2939 = vadd.xlane.f32.xlu0 %v2938
  %v2940 = vpop.xlane.xlu0 %2939
  %v2941 = vld [vmem:[#allocation2] sm:$0x1]
  %v2943 = vperm.slane %v2941, 0
  %v2945 = vadd.f32 %v2895, %v2943
  %v2946 = vadd.f32 %v2898, %v2943
  %v2947 = vadd.f32 %v2901, %v2943
  %v2948 = vadd.f32 %v2904, %v2943
  %v2949 = vadd.f32 %v2907, %v2943
  %v2950 = vadd.f32 %v2910, %v2943
  %v2951 = vadd.f32 %v2913, %v2943
  %v2952 = vadd.f32 %v2916, %v2943
  %v2953 = vadd.f32 %v2919, %v2943
  %v2954 = vadd.f32 %v2922, %v2943
  %v2955 = vadd.f32 %v2925, %v2943
  %v2956 = vadd.f32 %v2928, %v2943
  %v2957 = vadd.f32 %v2931, %v2943
  %v2958 = vadd.f32 %v2934, %v2943
  %v2959 = vadd.f32 %v2937, %v2943
  %v2960 = vadd.f32 %v2940, %v2943
  %v2961 = vlaneseq
  %v2962 = vshrl.u32 %v2961, 7
  %v2963 = vadd.s32 %v2962, 8
  %v2964 = vadd.s32 %v2962, 16
  %v2965 = vadd.s32 %v2962, 24
  %v2966 = vadd.s32 %v2962, 32
  %v2967 = vadd.s32 %v2962, 40
  %v2968 = vadd.s32 %v2962, 48
  %v2969 = vadd.s32 %v2962, 56
  %v2970 = vadd.s32 %v2962, 64
  %v2971 = vadd.s32 %v2962, 72
  %v2972 = vadd.s32 %v2962, 80
  %v2973 = vadd.s32 %v2962, 88
  %v2974 = vadd.s32 %v2962, 96
  %v2975 = vadd.s32 %v2962, 104
  %v2976 = vadd.s32 %v2962, 112
  %v2977 = vadd.s32 %v2962, 120
  %v2978 = vlaneseq
  %v2979 = vand.u32 %v2978, 127
  %vm2980 = vcmp.eq.s32.totalorder %v2962, %v2979
  %vm2981 = vcmp.eq.s32.totalorder %v2963, %v2979
  %vm2982 = vcmp.eq.s32.totalorder %v2964, %v2979
  %vm2983 = vcmp.eq.s32.totalorder %v2965, %v2979
  %vm2984 = vcmp.eq.s32.totalorder %v2966, %v2979
  %vm2985 = vcmp.eq.s32.totalorder %v2967, %v2979
  %vm2986 = vcmp.eq.s32.totalorder %v2968, %v2979
  %vm2987 = vcmp.eq.s32.totalorder %v2969, %v2979
  %vm2988 = vcmp.eq.s32.totalorder %v2970, %v2979
  %vm2989 = vcmp.eq.s32.totalorder %v2971, %v2979
  %vm2990 = vcmp.eq.s32.totalorder %v2972, %v2979
  %vm2991 = vcmp.eq.s32.totalorder %v2973, %v2979
  %vm2992 = vcmp.eq.s32.totalorder %v2974, %v2979
  %vm2993 = vcmp.eq.s32.totalorder %v2975, %v2979
  %vm2994 = vcmp.eq.s32.totalorder %v2976, %v2979
  %vm2995 = vcmp.eq.s32.totalorder %v2977, %v2979
  %v2996 = vsel %vm2980, 1, 0
  %v2997 = vsel %vm2981, 1, 0
  %v2998 = vsel %vm2982, 1, 0
  %v2999 = vsel %vm2983, 1, 0
  %v3000 = vsel %vm2984, 1, 0
  %v3001 = vsel %vm2985, 1, 0
  %v3002 = vsel %vm2986, 1, 0
  %v3003 = vsel %vm2987, 1, 0
  %v3004 = vsel %vm2988, 1, 0
  %v3005 = vsel %vm2989, 1, 0
  %v3006 = vsel %vm2990, 1, 0
  %v3007 = vsel %vm2991, 1, 0
  %v3008 = vsel %vm2992, 1, 0
  %v3009 = vsel %vm2993, 1, 0
  %v3010 = vsel %vm2994, 1, 0
  %v3011 = vsel %vm2995, 1, 0
  %v3012 = vcvt.s32.f32 %v2996
  %v3013 = vcvt.s32.f32 %v2997
  %v3014 = vcvt.s32.f32 %v2998
  %v3015 = vcvt.s32.f32 %v2999
  %v3016 = vcvt.s32.f32 %v3000
  %v3017 = vcvt.s32.f32 %v3001
  %v3018 = vcvt.s32.f32 %v3002
  %v3019 = vcvt.s32.f32 %v3003
  %v3020 = vcvt.s32.f32 %v3004
  %v3021 = vcvt.s32.f32 %v3005
  %v3022 = vcvt.s32.f32 %v3006
  %v3023 = vcvt.s32.f32 %v3007
  %v3024 = vcvt.s32.f32 %v3008
  %v3025 = vcvt.s32.f32 %v3009
  %v3026 = vcvt.s32.f32 %v3010
  %v3027 = vcvt.s32.f32 %v3011
  %3029 = vset.pattern.permute.xlu0 0
  %3030 = vperm.xlu0 %3029, %v2945
  %v3031 = vpop.permute.xlu0 %3030
  %3034 = vset.pattern.permute.xlu0 0
  %3035 = vperm.xlu0 %3034, %v2946
  %v3036 = vpop.permute.xlu0 %3035
  %3039 = vset.pattern.permute.xlu0 0
  %3040 = vperm.xlu0 %3039, %v2947
  %v3041 = vpop.permute.xlu0 %3040
  %3044 = vset.pattern.permute.xlu0 0
  %3045 = vperm.xlu0 %3044, %v2948
  %v3046 = vpop.permute.xlu0 %3045
  %3049 = vset.pattern.permute.xlu0 0
  %3050 = vperm.xlu0 %3049, %v2949
  %v3051 = vpop.permute.xlu0 %3050
  %3054 = vset.pattern.permute.xlu0 0
  %3055 = vperm.xlu0 %3054, %v2950
  %v3056 = vpop.permute.xlu0 %3055
  %3059 = vset.pattern.permute.xlu0 0
  %3060 = vperm.xlu0 %3059, %v2951
  %v3061 = vpop.permute.xlu0 %3060
  %3064 = vset.pattern.permute.xlu0 0
  %3065 = vperm.xlu0 %3064, %v2952
  %v3066 = vpop.permute.xlu0 %3065
  %3069 = vset.pattern.permute.xlu0 0
  %3070 = vperm.xlu0 %3069, %v2953
  %v3071 = vpop.permute.xlu0 %3070
  %3074 = vset.pattern.permute.xlu0 0
  %3075 = vperm.xlu0 %3074, %v2954
  %v3076 = vpop.permute.xlu0 %3075
  %3079 = vset.pattern.permute.xlu0 0
  %3080 = vperm.xlu0 %3079, %v2955
  %v3081 = vpop.permute.xlu0 %3080
  %3084 = vset.pattern.permute.xlu0 0
  %3085 = vperm.xlu0 %3084, %v2956
  %v3086 = vpop.permute.xlu0 %3085
  %3089 = vset.pattern.permute.xlu0 0
  %3090 = vperm.xlu0 %3089, %v2957
  %v3091 = vpop.permute.xlu0 %3090
  %3094 = vset.pattern.permute.xlu0 0
  %3095 = vperm.xlu0 %3094, %v2958
  %v3096 = vpop.permute.xlu0 %3095
  %3099 = vset.pattern.permute.xlu0 0
  %3100 = vperm.xlu0 %3099, %v2959
  %v3101 = vpop.permute.xlu0 %3100
  %3104 = vset.pattern.permute.xlu0 0
  %3105 = vperm.xlu0 %3104, %v2960
  %v3106 = vpop.permute.xlu0 %3105
  %v3108 = vmul.f32 %v3031, %v3012
  %v3109 = vmul.f32 %v3036, %v3013
  %v3110 = vmul.f32 %v3041, %v3014
  %v3111 = vmul.f32 %v3046, %v3015
  %v3112 = vmul.f32 %v3051, %v3016
  %v3113 = vmul.f32 %v3056, %v3017
  %v3114 = vmul.f32 %v3061, %v3018
  %v3115 = vmul.f32 %v3066, %v3019
  %v3116 = vmul.f32 %v3071, %v3020
  %v3117 = vmul.f32 %v3076, %v3021
  %v3118 = vmul.f32 %v3081, %v3022
  %v3119 = vmul.f32 %v3086, %v3023
  %v3120 = vmul.f32 %v3091, %v3024
  %v3121 = vmul.f32 %v3096, %v3025
  %v3122 = vmul.f32 %v3101, %v3026
  %v3123 = vmul.f32 %v3106, %v3027
  %v3124 = vadd.f32 %v3108, %v3109
  %v3125 = vadd.f32 %v3124, %v3110
  %v3126 = vadd.f32 %v3125, %v3111
  %v3127 = vadd.f32 %v3126, %v3112
  %v3128 = vadd.f32 %v3127, %v3113
  %v3129 = vadd.f32 %v3128, %v3114
  %v3130 = vadd.f32 %v3129, %v3115
  %v3131 = vadd.f32 %v3130, %v3116
  %v3132 = vadd.f32 %v3131, %v3117
  %v3133 = vadd.f32 %v3132, %v3118
  %v3134 = vadd.f32 %v3133, %v3119
  %v3135 = vadd.f32 %v3134, %v3120
  %v3136 = vadd.f32 %v3135, %v3121
  %v3137 = vadd.f32 %v3136, %v3122
  %v3138 = vadd.f32 %v3137, %v3123
  %v3139 = vrot.slane %v3138, 4
  %v3140 = vadd.f32 %v3138, %v3139
  %v3141 = vrot.slane %v3140, 2
  %v3142 = vadd.f32 %v3140, %v3141
  %v3143 = vrot.slane %v3142, 1
  %v3144 = vadd.f32 %v3142, %v3143
  %3145 = vst [vmem:[%s10] sm:$0x1] %v3144
  // Predicated region
  $region42: #{follow_pred.1} parent=0 // pred_check
    _
  $region43: #{follow_pred.1} parent=0 // pred_check_branch
    %3147 = sbr.rel (0) target = $region45
  $region44: #{follow_pred.1} parent=0 // pred_region
    _
  $region45: #{follow_pred.1} parent=0 // pred_fallthru
    _
  // Predicated region
  $region46: #{follow_pred.1} parent=0 // pred_check
    _
  $region47: #{follow_pred.1} parent=0 // pred_check_branch
    %3149 = sbr.rel (0) target = $region49
  $region48: #{follow_pred.1} parent=0 // pred_region
    _
  $region49: #{follow_pred.1} parent=0 // pred_fallthru
    _

</llo_original>
